<compile_context>
chip_gen: v6e
topology: v6e:2x2x1
jax: 0.10.0
libtpu: 0.0.40
codegen_flags: <defaults>
</compile_context>

<pallas_src>
import functools
import math

import jax
import jax.numpy as jnp
from jax.experimental import pallas as pl
from jax.experimental.pallas import tpu as pltpu

C_IN, H1, H2, FEAT = 3, 64, 128, 256     # encoder widths
OUT_DIM = 3                              # residual translation


# ---------------------------------------------------------------------------
# Kernel: both encoder passes fused; layers 2/3 stacked along M; N tiled as a
# pipelined reduction axis with an optional 2-way "parallel" split.
# ---------------------------------------------------------------------------
def encoder_pair_kernel(x_ref, w1r_ref, w1_ref, b1_ref, w2_ref, b2_ref,
                        w3_ref, b3_ref, feat_ref, h1_ref,
                        *, tn, n_valid, ragged, ep_dtype):
    """grid = (batch, split, n_tiles).  feat_ref (1, 2*FEAT) is resident across
    the n_tiles ("arbitrary") axis and is the running global-max accumulator."""
    n_idx = pl.program_id(2)

    @pl.when(n_idx == 0)
    def _init():
        # Post-ReLU activations are >= 0, so 0 is a valid identity for the max.
        feat_ref[...] = jnp.zeros_like(feat_ref)

    b1 = b1_ref[...]                                  # (1, H1) f32

    def layer1(col, w_ref):
        # VPU: 3 broadcast multiply-adds (keeps the MXU free; exact f32).
        w = w_ref[...]                                # (3, H1) f32
        h = (x_ref[:, col + 0:col + 1] * w[0:1, :]
             + x_ref[:, col + 1:col + 2] * w[1:2, :]
             + x_ref[:, col + 2:col + 3] * w[2:3, :]) + b1
        return jnp.maximum(h, 0.0).astype(h1_ref.dtype)

    # Stack both clouds along M so layers 2/3 each issue ONE MXU matmul.
    h1_ref[0:tn, :] = layer1(0, w1r_ref)              # live cloud (rotation folded into W1)
    h1_ref[tn:2 * tn, :] = layer1(3, w1_ref)          # bottleneck cloud

    h2 = jnp.dot(h1_ref[...], w2_ref[...], preferred_element_type=jnp.float32)
    h2 = jnp.maximum(h2.astype(ep_dtype) + b2_ref[...], 0)
    h3 = jnp.dot(h2.astype(w3_ref.dtype), w3_ref[...],
                 preferred_element_type=jnp.float32)
    h3 = jnp.maximum(h3.astype(ep_dtype) + b3_ref[...], 0)       # (2*tn, FEAT)

    if ragged:
        # Mask padded point rows out of the max (ReLU(bias) on pad rows could
        # otherwise exceed real maxima).  Real activations are >= 0, so 0 is safe.
        base = (pl.program_id(1) * pl.num_programs(2) + n_idx) * tn
        rows = jax.lax.broadcasted_iota(jnp.int32, (tn, 1), 0) + base
        valid = rows < n_valid
        f_live = jnp.max(jnp.where(valid, h3[0:tn, :], 0), axis=0, keepdims=True)
        f_bott = jnp.max(jnp.where(valid, h3[tn:2 * tn, :], 0), axis=0, keepdims=True)
    else:
        f_live = jnp.max(h3[0:tn, :], axis=0, keepdims=True)
        f_bott = jnp.max(h3[tn:2 * tn, :], axis=0, keepdims=True)

    # Two lane-aligned 256-wide (2x128) stores into the lane-dense 512 slab.
    feat_ref[:, 0:FEAT] = jnp.maximum(feat_ref[:, 0:FEAT], f_live.astype(jnp.float32))
    feat_ref[:, FEAT:] = jnp.maximum(feat_ref[:, FEAT:], f_bott.astype(jnp.float32))


# ---------------------------------------------------------------------------
# Generation-aware configuration
# ---------------------------------------------------------------------------
def _hw_config():
    """Returns (epilogue_dtype, max_point_tile, vmem_limit_bytes)."""
    try:
        kind = jax.devices()[0].device_kind.lower()
    except Exception:
        kind = ""
    if "v7" in kind or "tpu7" in kind or "7x" in kind:
        # 64 MiB physical VMEM: cap the tile and the scoped budget.
        return jnp.bfloat16, 4096, 48 * 1024 * 1024
    if "v6" in kind:
        # 128 MiB VMEM, bf16 VALU: big tiles + bf16 epilogue.
        return jnp.bfloat16, 8192, 96 * 1024 * 1024
    if "v5e" in kind or "v5 lite" in kind or "v5lite" in kind:
        # 128 MiB VMEM but no bf16 VPU: keep the epilogue in f32.
        return jnp.float32, 8192, 96 * 1024 * 1024
    # Unknown / older generation: previously-validated conservative baseline.
    return jnp.float32, 2048, 32 * 1024 * 1024


def _round_up(a, m):
    return ((a + m - 1) // m) * m


def _choose_point_tile(n, max_tile):
    """Largest near-balanced tile <= max_tile (multiple of 8 sublanes)."""
    if n <= max_tile:
        return _round_up(n, 8)
    k = math.ceil(n / max_tile)
    return _round_up(math.ceil(n / k), 8)


# ---------------------------------------------------------------------------
# Wrappers
# ---------------------------------------------------------------------------
def run_encoder_pair(x0, x1, w1_rot, w1, b1, w2, b2, w3, b3,
                     *, compute_dtype=jnp.bfloat16, max_points_per_tile=None):
    """x0, x1: (B, N, 3) f32.  w1_rot: (B, 3, 64) rotation-fused layer-1 weights.
    Returns (B, 2*FEAT) = concat(maxpool(MLP(rot(x0))), maxpool(MLP(x1)))."""
    B, N, _ = x0.shape
    ep_dtype, max_tile, vmem_limit = _hw_config()
    if max_points_per_tile is not None:
        max_tile = max_points_per_tile
    tn = _choose_point_tile(N, max_tile)

    # Split the point-tile axis into 2 "parallel" partial accumulators when the
    # batch axis alone cannot keep both v7x TensorCores busy (odd / unit B).
    n_tiles = math.ceil(N / tn)
    split = 2 if (B % 2 == 1 and n_tiles >= 2) else 1
    nps = math.ceil(n_tiles / split)
    n_pad = split * nps * tn
    ragged = n_pad != N

    # Pack both clouds into one lane-sparse block (lanes 0-2 = pc0, 3-5 = pc1).
    x = jnp.concatenate([x0, x1], axis=-1).astype(jnp.float32)    # (B, N, 6)
    if ragged:
        x = jnp.pad(x, ((0, 0), (0, n_pad - N), (0, 0)))

    w2c = w2.astype(compute_dtype)
    w3c = w3.astype(compute_dtype)
    b2c = b2.astype(ep_dtype)
    b3c = b3.astype(ep_dtype)

    kernel = functools.partial(encoder_pair_kernel, tn=tn, n_valid=N,
                               ragged=ragged, ep_dtype=ep_dtype)

    def const_spec(shape):
        return pl.BlockSpec(shape, lambda b, c, n: (0,) * len(shape))

    feat = pl.pallas_call(
        kernel,
        grid=(B, split, nps),
        in_specs=[
            pl.BlockSpec((None, tn, 2 * C_IN), lambda b, c, n: (b, c * nps + n, 0)),
            pl.BlockSpec((None, C_IN, H1), lambda b, c, n: (b, 0, 0)),   # R^T @ W1
            const_spec((C_IN, H1)),                                      # W1 (pc1 path)
            const_spec((1, H1)),
            const_spec((H1, H2)),
            const_spec((1, H2)),
            const_spec((H2, FEAT)),
            const_spec((1, FEAT)),
        ],
        out_specs=pl.BlockSpec((None, None, 1, 2 * FEAT), lambda b, c, n: (b, c, 0, 0)),
        out_shape=jax.ShapeDtypeStruct((B, split, 1, 2 * FEAT), jnp.float32),
        scratch_shapes=[pltpu.VMEM((2 * tn, H1), compute_dtype)],
        compiler_params=pltpu.CompilerParams(
            dimension_semantics=("parallel", "parallel", "arbitrary"),
            vmem_limit_bytes=vmem_limit,
        ),
    )(x, w1_rot, w1, b1, w2c, b2c, w3c, b3c)

    # Combine per-split partial maxima (features >= 0, so an all-pad split's
    # zero vector is neutral).
    return jnp.max(feat, axis=1)[:, 0, :]                          # (B, 512)


def pointnetv3_treg_forward(pc0, pc1, rot_pred, enc_params, head_w, head_b,
                            *, max_points_per_tile=None):
    """pc0, pc1: (B, 3, N) (PyTorch NCW layout); rot_pred: (B,) in [-1, 1].
    Returns (res_translation_pred (B, 3), rotated_pc0_centre (B, 3))."""
    w1, b1, w2, b2, w3, b3 = enc_params
    x0 = jnp.transpose(pc0, (0, 2, 1)).astype(jnp.float32)   # (B, N, 3)
    x1 = jnp.transpose(pc1, (0, 2, 1)).astype(jnp.float32)

    # z-rotation, angle = rot_pred * pi/4; rotated points = x @ R^T.
    ang = rot_pred.astype(jnp.float32) * (jnp.pi / 4.0)
    c, s = jnp.cos(ang), jnp.sin(ang)
    z, o = jnp.zeros_like(c), jnp.ones_like(c)
    rt = jnp.stack([jnp.stack([c,  s, z], axis=-1),
                    jnp.stack([-s, c, z], axis=-1),
                    jnp.stack([z,  z, o], axis=-1)], axis=-2)  # (B, 3, 3) = R^T

    # Fuse the rotation into layer 1:  (x @ R^T) @ W1 == x @ (R^T @ W1).
    w1_rot = jnp.einsum('bij,jk->bik', rt, w1)                 # (B, 3, 64)

    feats = run_encoder_pair(x0, x1, w1_rot, w1, b1, w2, b2, w3, b3,
                             max_points_per_tile=max_points_per_tile)  # (B, 512)

    # Linear(512 -> 3): a few hundred FLOPs -> plain XLA.
    res_translation_pred = feats @ head_w + head_b                # (B, 3)

    # rotated pc0 centre: mean_N(x0 @ R^T) == mean_N(x0) @ R^T (exact, linear).
    rotated_pc0_centre = jnp.einsum('bj,bjk->bk', jnp.mean(x0, axis=1), rt)
    return res_translation_pred, rotated_pc0_centre


# ---------------------------------------------------------------------------
# Deterministic parameters (BatchNorm folded into the 1x1-conv weights)
# ---------------------------------------------------------------------------
def make_params(key):
    ks = jax.random.split(key, 12)

    def conv_bn(kw, kb, kg, kbeta, cin, cout):
        w = jax.random.normal(kw, (cin, cout), jnp.float32) * (1.0 / jnp.sqrt(cin))
        b = jax.random.normal(kb, (1, cout), jnp.float32) * 0.01
        gamma = 1.0 + 0.1 * jax.random.normal(kg, (cout,), jnp.float32)
        beta = 0.1 * jax.random.normal(kbeta, (cout,), jnp.float32)
        run_mean = jnp.zeros((cout,), jnp.float32)
        run_var = jnp.ones((cout,), jnp.float32)
        scale = gamma / jnp.sqrt(run_var + 1e-5)
        return w * scale[None, :], (b - run_mean[None, :]) * scale[None, :] + beta[None, :]

    w1, b1 = conv_bn(ks[0], ks[1], ks[2], ks[3], C_IN, H1)
    w2, b2 = conv_bn(ks[4], ks[5], ks[6], ks[7], H1, H2)
    w3, b3 = conv_bn(ks[8], ks[9], ks[10], ks[11], H2, FEAT)
    enc_params = (w1, b1, w2, b2, w3, b3)

    kh = jax.random.split(jax.random.fold_in(key, 123), 2)
    head_w = jax.random.normal(kh[0], (2 * FEAT, OUT_DIM), jnp.float32) \
        * (1.0 / jnp.sqrt(2 * FEAT))
    head_b = jax.random.normal(kh[1], (1, OUT_DIM), jnp.float32) * 0.01
    return enc_params, head_w, head_b


# ---------------------------------------------------------------------------
# Pure-JAX reference (mirrors the kernel's compute dtypes) for a sanity check
# ---------------------------------------------------------------------------
def reference_forward(pc0, pc1, rot_pred, enc_params, head_w, head_b,
                      compute_dtype=jnp.bfloat16, ep_dtype=jnp.float32):
    w1, b1, w2, b2, w3, b3 = enc_params
    x0 = jnp.transpose(pc0, (0, 2, 1)).astype(jnp.float32)
    x1 = jnp.transpose(pc1, (0, 2, 1)).astype(jnp.float32)
    ang = rot_pred.astype(jnp.float32) * (jnp.pi / 4.0)
    c, s = jnp.cos(ang), jnp.sin(ang)
    z, o = jnp.zeros_like(c), jnp.ones_like(c)
    rt = jnp.stack([jnp.stack([c,  s, z], -1),
                    jnp.stack([-s, c, z], -1),
                    jnp.stack([z,  z, o], -1)], -2)
    x0r = jnp.einsum('bnj,bjk->bnk', x0, rt)

    def enc(x):
        h1 = jnp.maximum(jnp.einsum('bnj,jk->bnk', x, w1) + b1, 0.0)
        h1 = h1.astype(compute_dtype)
        h2 = jnp.einsum('bnj,jk->bnk', h1, w2.astype(compute_dtype),
                        preferred_element_type=jnp.float32).astype(ep_dtype)
        h2 = jnp.maximum(h2 + b2.astype(ep_dtype), 0).astype(compute_dtype)
        h3 = jnp.einsum('bnj,jk->bnk', h2, w3.astype(compute_dtype),
                        preferred_element_type=jnp.float32).astype(ep_dtype)
        h3 = jnp.maximum(h3 + b3.astype(ep_dtype), 0)
        return jnp.max(h3, axis=1).astype(jnp.float32)

    out = jnp.concatenate([enc(x0r), enc(x1)], axis=1)
    return out @ head_w + head_b, jnp.mean(x0r, axis=1)


# ---------------------------------------------------------------------------
if __name__ == "__main__":
    key = jax.random.PRNGKey(0)
    ep_dtype, _, _ = _hw_config()

    # ---- Test 1: B=2, N=128 (single tile, no split, no masking) -------------
    B, N = 2, 128
    k0, k1, k2, kp = jax.random.split(key, 4)
    pc0 = jax.random.normal(k0, (B, 3, N), jnp.float32)   # batch['pc0']
    pc1 = jax.random.normal(k1, (B, 3, N), jnp.float32)   # batch['pc1']
    rot_pred = jax.random.uniform(k2, (B,), jnp.float32, -1.0, 1.0)
    enc_params, head_w, head_b = make_params(kp)

    fwd = jax.jit(pointnetv3_treg_forward)
    res_t, rot_c = fwd(pc0, pc1, rot_pred, enc_params, head_w, head_b)
    jax.block_until_ready((res_t, rot_c))
    assert res_t.shape == (B, OUT_DIM)
    assert rot_c.shape == (B, C_IN)

    ref_t, ref_c = reference_forward(pc0, pc1, rot_pred, enc_params, head_w,
                                     head_b, ep_dtype=ep_dtype)
    assert jnp.allclose(res_t, ref_t, atol=5e-2, rtol=5e-2)
    assert jnp.allclose(rot_c, ref_c, atol=1e-4, rtol=1e-4)

    # ---- Test 2: B=1 (odd), N=200, forced tiny tile ---------------------------
    # Exercises the multi-tile accumulator, the 2-way split and ragged masking.
    B2, N2 = 1, 200
    k3, k4, k5 = jax.random.split(jax.random.fold_in(key, 7), 3)
    pc0b = jax.random.normal(k3, (B2, 3, N2), jnp.float32)
    pc1b = jax.random.normal(k4, (B2, 3, N2), jnp.float32)
    rotb = jax.random.uniform(k5, (B2,), jnp.float32, -1.0, 1.0)

    fwd2 = jax.jit(functools.partial(pointnetv3_treg_forward, max_points_per_tile=64))
    res_t2, rot_c2 = fwd2(pc0b, pc1b, rotb, enc_params, head_w, head_b)
    jax.block_until_ready((res_t2, rot_c2))
    ref_t2, ref_c2 = reference_forward(pc0b, pc1b, rotb, enc_params, head_w,
                                       head_b, ep_dtype=ep_dtype)
    assert res_t2.shape == (B2, OUT_DIM)
    assert jnp.allclose(res_t2, ref_t2, atol=5e-2, rtol=5e-2)
    assert jnp.allclose(rot_c2, ref_c2, atol=1e-4, rtol=1e-4)

    print("KERNEL_OK")
</pallas_src>

<mosaic_0001>
module attributes {stable_mosaic.version = 11 : i64} {
  func.func @encoder_pair_kernel(%arg0: i32, %arg1: i32, %arg2: i32, %arg3: memref<1x128x6xf32, #tpu.memory_space<vmem>>, %arg4: memref<1x3x64xf32, #tpu.memory_space<vmem>>, %arg5: memref<3x64xf32, #tpu.memory_space<vmem>>, %arg6: memref<1x64xf32, #tpu.memory_space<vmem>>, %arg7: memref<64x128xbf16, #tpu.memory_space<vmem>>, %arg8: memref<1x128xf32, #tpu.memory_space<vmem>>, %arg9: memref<128x256xbf16, #tpu.memory_space<vmem>>, %arg10: memref<1x256xf32, #tpu.memory_space<vmem>>, %arg11: memref<1x1x1x512xf32, #tpu.memory_space<vmem>>, %arg12: memref<256x64xbf16, #tpu.memory_space<vmem>>) attributes {dimension_semantics = [#tpu.dimension_semantics<parallel>, #tpu.dimension_semantics<parallel>, #tpu.dimension_semantics<arbitrary>], iteration_bounds = array<i64: 2, 1, 1>, scalar_prefetch = 0 : i64, scratch_operands = 1 : i64, tpu.core_type = #tpu.core_type<tc>, window_params = [{transform_indices = @transform_0, window_bounds = array<i64: 1, 128, 6>}, {transform_indices = @transform_1, window_bounds = array<i64: 1, 3, 64>}, {pipeline_mode = #tpu.pipeline_mode<synchronous>, transform_indices = @transform_2, window_bounds = array<i64: 3, 64>}, {pipeline_mode = #tpu.pipeline_mode<synchronous>, transform_indices = @transform_3, window_bounds = array<i64: 1, 64>}, {pipeline_mode = #tpu.pipeline_mode<synchronous>, transform_indices = @transform_4, window_bounds = array<i64: 64, 128>}, {pipeline_mode = #tpu.pipeline_mode<synchronous>, transform_indices = @transform_5, window_bounds = array<i64: 1, 128>}, {pipeline_mode = #tpu.pipeline_mode<synchronous>, transform_indices = @transform_6, window_bounds = array<i64: 128, 256>}, {pipeline_mode = #tpu.pipeline_mode<synchronous>, transform_indices = @transform_7, window_bounds = array<i64: 1, 256>}, {transform_indices = @transform_8, window_bounds = array<i64: 1, 1, 1, 512>}]} {
    %c0_i32 = arith.constant 0 : i32
    %0 = arith.cmpi eq, %arg2, %c0_i32 : i32
    %1 = arith.extui %0 : i1 to i32
    %c0_i32_0 = arith.constant 0 : i32
    %2 = arith.cmpi ne, %1, %c0_i32_0 : i32
    scf.if %2 {
      %cst_55 = arith.constant 0.000000e+00 : f32
      %93 = vector.broadcast %cst_55 : f32 to vector<1x512xf32>
      %c0_56 = arith.constant 0 : index
      %c0_57 = arith.constant 0 : index
      %c0_58 = arith.constant 0 : index
      %c0_59 = arith.constant 0 : index
      %94 = vector.load %arg11[%c0_56, %c0_57, %c0_58, %c0_59] : memref<1x1x1x512xf32, #tpu.memory_space<vmem>>, vector<1x1x1x512xf32>
      %95 = vector.shape_cast %94 : vector<1x1x1x512xf32> to vector<1x512xf32>
      %96 = vector.shape_cast %93 : vector<1x512xf32> to vector<1x1x1x512xf32>
      tpu.vector_store %arg11[%c0_56, %c0_57, %c0_58, %c0_59], %96 {strides = array<i32>} : memref<1x1x1x512xf32, #tpu.memory_space<vmem>>, vector<1x1x1x512xf32>,
    } else {
    }
    %c0 = arith.constant 0 : index
    %c0_1 = arith.constant 0 : index
    %3 = vector.load %arg6[%c0, %c0_1] : memref<1x64xf32, #tpu.memory_space<vmem>>, vector<1x64xf32>
    %c0_2 = arith.constant 0 : index
    %c0_3 = arith.constant 0 : index
    %c0_4 = arith.constant 0 : index
    %4 = vector.load %arg4[%c0_2, %c0_3, %c0_4] : memref<1x3x64xf32, #tpu.memory_space<vmem>>, vector<1x3x64xf32>
    %5 = vector.shape_cast %4 : vector<1x3x64xf32> to vector<3x64xf32>
    %c0_5 = arith.constant 0 : index
    %c0_6 = arith.constant 0 : index
    %c0_7 = arith.constant 0 : index
    %6 = vector.load %arg3[%c0_5, %c0_6, %c0_7] : memref<1x128x6xf32, #tpu.memory_space<vmem>>, vector<1x128x1xf32>
    %7 = vector.shape_cast %6 : vector<1x128x1xf32> to vector<128x1xf32>
    %8 = vector.extract_strided_slice %5 {offsets = [0, 0], sizes = [1, 64], strides = [1, 1]} : vector<3x64xf32> to vector<1x64xf32>
    %9 = vector.broadcast %7 : vector<128x1xf32> to vector<128x64xf32>
    %10 = vector.broadcast %8 : vector<1x64xf32> to vector<128x64xf32>
    %11 = arith.mulf %9, %10 : vector<128x64xf32>
    %c0_8 = arith.constant 0 : index
    %c0_9 = arith.constant 0 : index
    %c1 = arith.constant 1 : index
    %12 = vector.load %arg3[%c0_8, %c0_9, %c1] : memref<1x128x6xf32, #tpu.memory_space<vmem>>, vector<1x128x1xf32>
    %13 = vector.shape_cast %12 : vector<1x128x1xf32> to vector<128x1xf32>
    %14 = vector.extract_strided_slice %5 {offsets = [1, 0], sizes = [1, 64], strides = [1, 1]} : vector<3x64xf32> to vector<1x64xf32>
    %15 = vector.broadcast %13 : vector<128x1xf32> to vector<128x64xf32>
    %16 = vector.broadcast %14 : vector<1x64xf32> to vector<128x64xf32>
    %17 = arith.mulf %15, %16 : vector<128x64xf32>
    %18 = arith.addf %11, %17 : vector<128x64xf32>
    %c0_10 = arith.constant 0 : index
    %c0_11 = arith.constant 0 : index
    %c2 = arith.constant 2 : index
    %19 = vector.load %arg3[%c0_10, %c0_11, %c2] : memref<1x128x6xf32, #tpu.memory_space<vmem>>, vector<1x128x1xf32>
    %20 = vector.shape_cast %19 : vector<1x128x1xf32> to vector<128x1xf32>
    %21 = vector.extract_strided_slice %5 {offsets = [2, 0], sizes = [1, 64], strides = [1, 1]} : vector<3x64xf32> to vector<1x64xf32>
    %22 = vector.broadcast %20 : vector<128x1xf32> to vector<128x64xf32>
    %23 = vector.broadcast %21 : vector<1x64xf32> to vector<128x64xf32>
    %24 = arith.mulf %22, %23 : vector<128x64xf32>
    %25 = arith.addf %18, %24 : vector<128x64xf32>
    %26 = vector.broadcast %3 : vector<1x64xf32> to vector<128x64xf32>
    %27 = arith.addf %25, %26 : vector<128x64xf32>
    %cst = arith.constant 0.000000e+00 : f32
    %28 = vector.broadcast %cst : f32 to vector<128x64xf32>
    %29 = arith.maximumf %27, %28 : vector<128x64xf32>
    %30 = arith.truncf %29 : vector<128x64xf32> to vector<128x64xbf16>
    %c0_12 = arith.constant 0 : index
    %c0_13 = arith.constant 0 : index
    %31 = vector.load %arg12[%c0_12, %c0_13] : memref<256x64xbf16, #tpu.memory_space<vmem>>, vector<128x64xbf16>
    tpu.vector_store %arg12[%c0_12, %c0_13], %30 {strides = array<i32>} : memref<256x64xbf16, #tpu.memory_space<vmem>>, vector<128x64xbf16>,
    %c0_14 = arith.constant 0 : index
    %c0_15 = arith.constant 0 : index
    %32 = vector.load %arg5[%c0_14, %c0_15] : memref<3x64xf32, #tpu.memory_space<vmem>>, vector<3x64xf32>
    %c0_16 = arith.constant 0 : index
    %c0_17 = arith.constant 0 : index
    %c3 = arith.constant 3 : index
    %33 = vector.load %arg3[%c0_16, %c0_17, %c3] : memref<1x128x6xf32, #tpu.memory_space<vmem>>, vector<1x128x1xf32>
    %34 = vector.shape_cast %33 : vector<1x128x1xf32> to vector<128x1xf32>
    %35 = vector.extract_strided_slice %32 {offsets = [0, 0], sizes = [1, 64], strides = [1, 1]} : vector<3x64xf32> to vector<1x64xf32>
    %36 = vector.broadcast %34 : vector<128x1xf32> to vector<128x64xf32>
    %37 = vector.broadcast %35 : vector<1x64xf32> to vector<128x64xf32>
    %38 = arith.mulf %36, %37 : vector<128x64xf32>
    %c0_18 = arith.constant 0 : index
    %c0_19 = arith.constant 0 : index
    %c4 = arith.constant 4 : index
    %39 = vector.load %arg3[%c0_18, %c0_19, %c4] : memref<1x128x6xf32, #tpu.memory_space<vmem>>, vector<1x128x1xf32>
    %40 = vector.shape_cast %39 : vector<1x128x1xf32> to vector<128x1xf32>
    %41 = vector.extract_strided_slice %32 {offsets = [1, 0], sizes = [1, 64], strides = [1, 1]} : vector<3x64xf32> to vector<1x64xf32>
    %42 = vector.broadcast %40 : vector<128x1xf32> to vector<128x64xf32>
    %43 = vector.broadcast %41 : vector<1x64xf32> to vector<128x64xf32>
    %44 = arith.mulf %42, %43 : vector<128x64xf32>
    %45 = arith.addf %38, %44 : vector<128x64xf32>
    %c0_20 = arith.constant 0 : index
    %c0_21 = arith.constant 0 : index
    %c5 = arith.constant 5 : index
    %46 = vector.load %arg3[%c0_20, %c0_21, %c5] : memref<1x128x6xf32, #tpu.memory_space<vmem>>, vector<1x128x1xf32>
    %47 = vector.shape_cast %46 : vector<1x128x1xf32> to vector<128x1xf32>
    %48 = vector.extract_strided_slice %32 {offsets = [2, 0], sizes = [1, 64], strides = [1, 1]} : vector<3x64xf32> to vector<1x64xf32>
    %49 = vector.broadcast %47 : vector<128x1xf32> to vector<128x64xf32>
    %50 = vector.broadcast %48 : vector<1x64xf32> to vector<128x64xf32>
    %51 = arith.mulf %49, %50 : vector<128x64xf32>
    %52 = arith.addf %45, %51 : vector<128x64xf32>
    %53 = vector.broadcast %3 : vector<1x64xf32> to vector<128x64xf32>
    %54 = arith.addf %52, %53 : vector<128x64xf32>
    %cst_22 = arith.constant 0.000000e+00 : f32
    %55 = vector.broadcast %cst_22 : f32 to vector<128x64xf32>
    %56 = arith.maximumf %54, %55 : vector<128x64xf32>
    %57 = arith.truncf %56 : vector<128x64xf32> to vector<128x64xbf16>
    %c128 = arith.constant 128 : index
    %c0_23 = arith.constant 0 : index
    %58 = vector.load %arg12[%c128, %c0_23] : memref<256x64xbf16, #tpu.memory_space<vmem>>, vector<128x64xbf16>
    tpu.vector_store %arg12[%c128, %c0_23], %57 {strides = array<i32>} : memref<256x64xbf16, #tpu.memory_space<vmem>>, vector<128x64xbf16>,
    %c0_24 = arith.constant 0 : index
    %c0_25 = arith.constant 0 : index
    %59 = vector.load %arg12[%c0_24, %c0_25] : memref<256x64xbf16, #tpu.memory_space<vmem>>, vector<256x64xbf16>
    %c0_26 = arith.constant 0 : index
    %c0_27 = arith.constant 0 : index
    %60 = vector.load %arg7[%c0_26, %c0_27] : memref<64x128xbf16, #tpu.memory_space<vmem>>, vector<64x128xbf16>
    %cst_28 = arith.constant dense<0.000000e+00> : vector<256x128xf32>
    %61 = tpu.matmul %59, %60, %cst_28 {dimension_numbers = #tpu.dot_dimension_numbers<[1], [0], [0], [1], [0, 0, 1, 1], [], []>} : vector<256x64xbf16>, vector<64x128xbf16>, vector<256x128xf32> -> vector<256x128xf32>
    %c0_29 = arith.constant 0 : index
    %c0_30 = arith.constant 0 : index
    %62 = vector.load %arg8[%c0_29, %c0_30] : memref<1x128xf32, #tpu.memory_space<vmem>>, vector<1x128xf32>
    %63 = vector.broadcast %62 : vector<1x128xf32> to vector<256x128xf32>
    %64 = arith.addf %61, %63 : vector<256x128xf32>
    %cst_31 = arith.constant 0.000000e+00 : f32
    %65 = vector.broadcast %cst_31 : f32 to vector<256x128xf32>
    %66 = arith.maximumf %64, %65 : vector<256x128xf32>
    %67 = arith.truncf %66 : vector<256x128xf32> to vector<256x128xbf16>
    %c0_32 = arith.constant 0 : index
    %c0_33 = arith.constant 0 : index
    %68 = vector.load %arg9[%c0_32, %c0_33] : memref<128x256xbf16, #tpu.memory_space<vmem>>, vector<128x256xbf16>
    %cst_34 = arith.constant dense<0.000000e+00> : vector<256x256xf32>
    %69 = tpu.matmul %67, %68, %cst_34 {dimension_numbers = #tpu.dot_dimension_numbers<[1], [0], [0], [1], [0, 0, 1, 1], [], []>} : vector<256x128xbf16>, vector<128x256xbf16>, vector<256x256xf32> -> vector<256x256xf32>
    %c0_35 = arith.constant 0 : index
    %c0_36 = arith.constant 0 : index
    %70 = vector.load %arg10[%c0_35, %c0_36] : memref<1x256xf32, #tpu.memory_space<vmem>>, vector<1x256xf32>
    %71 = vector.broadcast %70 : vector<1x256xf32> to vector<256x256xf32>
    %72 = arith.addf %69, %71 : vector<256x256xf32>
    %cst_37 = arith.constant 0.000000e+00 : f32
    %73 = vector.broadcast %cst_37 : f32 to vector<256x256xf32>
    %74 = arith.maximumf %72, %73 : vector<256x256xf32>
    %75 = vector.extract_strided_slice %74 {offsets = [0, 0], sizes = [128, 256], strides = [1, 1]} : vector<256x256xf32> to vector<128x256xf32>
    %cst_38 = arith.constant dense<0xFF800000> : vector<256xf32>
    %76 = vector.multi_reduction <maximumf>, %75, %cst_38 [0] : vector<128x256xf32> to vector<256xf32>
    %77 = vector.shape_cast %76 : vector<256xf32> to vector<1x256xf32>
    %78 = vector.extract_strided_slice %74 {offsets = [128, 0], sizes = [128, 256], strides = [1, 1]} : vector<256x256xf32> to vector<128x256xf32>
    %cst_39 = arith.constant dense<0xFF800000> : vector<256xf32>
    %79 = vector.multi_reduction <maximumf>, %78, %cst_39 [0] : vector<128x256xf32> to vector<256xf32>
    %80 = vector.shape_cast %79 : vector<256xf32> to vector<1x256xf32>
    %c0_40 = arith.constant 0 : index
    %c0_41 = arith.constant 0 : index
    %c0_42 = arith.constant 0 : index
    %c0_43 = arith.constant 0 : index
    %81 = vector.load %arg11[%c0_40, %c0_41, %c0_42, %c0_43] : memref<1x1x1x512xf32, #tpu.memory_space<vmem>>, vector<1x1x1x256xf32>
    %82 = vector.shape_cast %81 : vector<1x1x1x256xf32> to vector<1x256xf32>
    %83 = arith.maximumf %82, %77 : vector<1x256xf32>
    %c0_44 = arith.constant 0 : index
    %c0_45 = arith.constant 0 : index
    %c0_46 = arith.constant 0 : index
    %c0_47 = arith.constant 0 : index
    %84 = vector.load %arg11[%c0_44, %c0_45, %c0_46, %c0_47] : memref<1x1x1x512xf32, #tpu.memory_space<vmem>>, vector<1x1x1x256xf32>
    %85 = vector.shape_cast %84 : vector<1x1x1x256xf32> to vector<1x256xf32>
    %86 = vector.shape_cast %83 : vector<1x256xf32> to vector<1x1x1x256xf32>
    tpu.vector_store %arg11[%c0_44, %c0_45, %c0_46, %c0_47], %86 {strides = array<i32>} : memref<1x1x1x512xf32, #tpu.memory_space<vmem>>, vector<1x1x1x256xf32>,
    %c0_48 = arith.constant 0 : index
    %c0_49 = arith.constant 0 : index
    %c0_50 = arith.constant 0 : index
    %c256 = arith.constant 256 : index
    %87 = vector.load %arg11[%c0_48, %c0_49, %c0_50, %c256] : memref<1x1x1x512xf32, #tpu.memory_space<vmem>>, vector<1x1x1x256xf32>
    %88 = vector.shape_cast %87 : vector<1x1x1x256xf32> to vector<1x256xf32>
    %89 = arith.maximumf %88, %80 : vector<1x256xf32>
    %c0_51 = arith.constant 0 : index
    %c0_52 = arith.constant 0 : index
    %c0_53 = arith.constant 0 : index
    %c256_54 = arith.constant 256 : index
    %90 = vector.load %arg11[%c0_51, %c0_52, %c0_53, %c256_54] : memref<1x1x1x512xf32, #tpu.memory_space<vmem>>, vector<1x1x1x256xf32>
    %91 = vector.shape_cast %90 : vector<1x1x1x256xf32> to vector<1x256xf32>
    %92 = vector.shape_cast %89 : vector<1x256xf32> to vector<1x1x1x256xf32>
    tpu.vector_store %arg11[%c0_51, %c0_52, %c0_53, %c256_54], %92 {strides = array<i32>} : memref<1x1x1x512xf32, #tpu.memory_space<vmem>>, vector<1x1x1x256xf32>,
    return
  }
  func.func @transform_0(%arg0: i32, %arg1: i32, %arg2: i32) -> (i32, i32, i32) {
    %c1_i32 = arith.constant 1 : i32
    %0 = arith.muli %arg1, %c1_i32 : i32
    %1 = arith.addi %0, %arg2 : i32
    %c0_i32 = arith.constant 0 : i32
    %c0_i32_0 = arith.constant 0 : i32
    return %arg0, %1, %c0_i32 : i32, i32, i32
  }
  func.func @transform_1(%arg0: i32, %arg1: i32, %arg2: i32) -> (i32, i32, i32) {
    %c0_i32 = arith.constant 0 : i32
    %c0_i32_0 = arith.constant 0 : i32
    %c0_i32_1 = arith.constant 0 : i32
    return %arg0, %c0_i32, %c0_i32_0 : i32, i32, i32
  }
  func.func @transform_2(%arg0: i32, %arg1: i32, %arg2: i32) -> (i32, i32) {
    %c0_i32 = arith.constant 0 : i32
    %c0_i32_0 = arith.constant 0 : i32
    %c0_i32_1 = arith.constant 0 : i32
    return %c0_i32, %c0_i32_0 : i32, i32
  }
  func.func @transform_3(%arg0: i32, %arg1: i32, %arg2: i32) -> (i32, i32) {
    %c0_i32 = arith.constant 0 : i32
    %c0_i32_0 = arith.constant 0 : i32
    %c0_i32_1 = arith.constant 0 : i32
    return %c0_i32, %c0_i32_0 : i32, i32
  }
  func.func @transform_4(%arg0: i32, %arg1: i32, %arg2: i32) -> (i32, i32) {
    %c0_i32 = arith.constant 0 : i32
    %c0_i32_0 = arith.constant 0 : i32
    %c0_i32_1 = arith.constant 0 : i32
    return %c0_i32, %c0_i32_0 : i32, i32
  }
  func.func @transform_5(%arg0: i32, %arg1: i32, %arg2: i32) -> (i32, i32) {
    %c0_i32 = arith.constant 0 : i32
    %c0_i32_0 = arith.constant 0 : i32
    %c0_i32_1 = arith.constant 0 : i32
    return %c0_i32, %c0_i32_0 : i32, i32
  }
  func.func @transform_6(%arg0: i32, %arg1: i32, %arg2: i32) -> (i32, i32) {
    %c0_i32 = arith.constant 0 : i32
    %c0_i32_0 = arith.constant 0 : i32
    %c0_i32_1 = arith.constant 0 : i32
    return %c0_i32, %c0_i32_0 : i32, i32
  }
  func.func @transform_7(%arg0: i32, %arg1: i32, %arg2: i32) -> (i32, i32) {
    %c0_i32 = arith.constant 0 : i32
    %c0_i32_0 = arith.constant 0 : i32
    %c0_i32_1 = arith.constant 0 : i32
    return %c0_i32, %c0_i32_0 : i32, i32
  }
  func.func @transform_8(%arg0: i32, %arg1: i32, %arg2: i32) -> (i32, i32, i32, i32) {
    %c0_i32 = arith.constant 0 : i32
    %c0_i32_0 = arith.constant 0 : i32
    %c0_i32_1 = arith.constant 0 : i32
    return %arg0, %arg1, %c0_i32, %c0_i32_0 : i32, i32, i32, i32
  }
}

</mosaic_0001>

<llo_original>
// kernel: pointnetv3_treg_forward.1
$region0: #{pointnetv3_treg_forward.1}
  #allocation0 [shape = 'u32[]', space=smem, size = 0x4, offset = 0x4, fixed_abs, tag = 'smem constant byte address 0x4 - core index']
  #allocation1 [shape = 'u32[144,128]{1,0:T(1,128)}', space=vmem, size = 0x12000, scoped, tag = 'internal scratch']
  #allocation2 [shape = 'bf16[256,64]{1,0:T(8,128)(2,1)}', space=vmem, size = 0x10000, scoped, tag = 'scratch operand']
  %s0 = inlined_call_operand.vmem [shape: f32[2,128,6], index: 0, kind: input, shape index: {}]
  %s1 = inlined_call_operand.vmem [shape: f32[2,3,64], index: 1, kind: input, shape index: {}]
  %s2 = inlined_call_operand.vmem [shape: f32[3,64], index: 2, kind: input, shape index: {}]
  %s3 = inlined_call_operand.vmem [shape: f32[1,64], index: 3, kind: input, shape index: {}]
  %s4 = inlined_call_operand.vmem [shape: bf16[64,128], index: 4, kind: input, shape index: {}]
  %s5 = inlined_call_operand.vmem [shape: f32[1,128], index: 5, kind: input, shape index: {}]
  %s6 = inlined_call_operand.vmem [shape: bf16[128,256], index: 6, kind: input, shape index: {}]
  %s7 = inlined_call_operand.vmem [shape: f32[1,256], index: 7, kind: input, shape index: {}]
  %s8 = inlined_call_operand.vmem [shape: f32[2,1,1,512], index: 8, kind: output, shape index: {}]
  %s9 = sld [smem:[#allocation0]]
  $region69: #{pointnetv3_treg_forward.1} parent=0
    _
  %s11 = ssub.s32 1, %s9
  %s12 = scalar_select 0, %s11, %s9
  loop: start=0, step=1, limit=4
  $region2: #{pointnetv3_treg_forward.1} parent=0 // loop_pre_header
    _
  $region3: #{pointnetv3_treg_forward.1} parent=0 // loop_header
    %s14 = sphi 0, %s18
    %p15 = scmp.ge.s32.totalorder %s14, 4
    %s21 = sphi 0, %s40
    %s22 = sphi 0, %s36
    %s23 = sphi 0, %s32
    %s24 = sphi 0, %s21
    %s25 = sphi 0, %s22
    %s26 = sphi 0, %s23
    %s27 = sphi 0, %s24
    %s28 = sphi 0, %s25
    %s29 = sphi 0, %s26
    %s47 = sphi 0, %s49
    %s50 = sphi 0, %s47
    %s51 = sphi 0, %s50
    %s67 = sphi 0, %s51
    %s73 = sphi 0, %s75
    %s76 = sphi 0, %s73
    %s77 = sphi 0, %s76
    %s93 = sphi 0, %s77
    %s97 = sphi 0, %s97
    %s99 = sphi 0, %s97
    %s100 = sphi 0, %s99
    %s114 = sphi 0, %s100
    %s118 = sphi 0, %s118
    %s120 = sphi 0, %s118
    %s121 = sphi 0, %s120
    %s135 = sphi 0, %s121
    %s139 = sphi 0, %s139
    %s141 = sphi 0, %s139
    %s142 = sphi 0, %s141
    %s156 = sphi 0, %s142
    %s160 = sphi 0, %s160
    %s162 = sphi 0, %s160
    %s163 = sphi 0, %s162
    %s177 = sphi 0, %s163
    %s181 = sphi 0, %s181
    %s183 = sphi 0, %s181
    %s184 = sphi 0, %s183
    %s198 = sphi 0, %s184
    %s202 = sphi 0, %s202
    %s204 = sphi 0, %s202
    %s205 = sphi 0, %s204
    %s219 = sphi 0, %s205
    %s227 = sphi 0, %s229
    %s230 = sphi 0, %s227
    %s231 = sphi 0, %s230
    %s247 = sphi 0, %s231
  $region4: #{pointnetv3_treg_forward.1} parent=0 // loop_header_branch
    %17 = sbr.rel (%p15) target = $region8
  $region5: #{pointnetv3_treg_forward.1} parent=0 // loop_body
    %s19 = ssub.s32 %s14, 1
    %s20 = ssub.s32 %s14, 2
    %s30 = sadd.s32 1, %s23
    %p31 = scmp.ge.s32.totalorder %s30, 1
    %s32 = scalar_select %p31, 0, %s30
    %s33 = sadd.s32 1, %s22
    %s34 = scalar_select %p31, %s33, %s22
    %p35 = scmp.ge.s32.totalorder %s34, 1
    %s36 = scalar_select %p35, 0, %s34
    %s37 = sadd.s32 1, %s21
    %s38 = scalar_select %p35, %s37, %s21
    %p39 = scmp.ge.s32.totalorder %s38, 2
    %s40 = scalar_select %p39, 0, %s38
    %s41 = sadd.s32 %s22, %s23
    %s42 = sadd.s32 %s36, %s32
    %s43 = ssub.s32 %s21, %s40
    %s44 = ssub.s32 %s41, %s42
    %s45 = sor.u32 %s43, %s44
    %p46 = scmp.eq.s32.totalorder %s45, 0
    %s48 = sadd.s32 %s47, 1
    %s49 = scalar_select %p46, %s47, %s48
    %p52 = pneg %p46
    %p53 = scmp.eq.s32.totalorder %s14, 1
    %p54 = por %p52, %p53
    %p55 = scmp.ne.s32.totalorder %s47, %s50
    %p56 = scmp.eq.s32.totalorder %s14, 0
    %p57 = por %p55, %p56
    %p58 = scmp.ne.s32.totalorder %s47, %s50
    %p59 = scmp.eq.s32.totalorder %s19, 1
    %p60 = por %p58, %p59
    %p61 = scmp.ne.s32.totalorder %s50, %s51
    %p62 = scmp.eq.s32.totalorder %s19, 0
    %p63 = por %p61, %p62
    %p64 = scmp.ne.s32.totalorder %s50, %s51
    %p65 = scmp.eq.s32.totalorder %s20, 1
    %p66 = por %p64, %p65
    %p68 = scmp.ne.s32.totalorder %s51, %s67
    %p69 = scmp.eq.s32.totalorder %s20, 0
    %p70 = por %p68, %p69
    %s71 = ssub.s32 %s21, %s40
    %p72 = scmp.eq.s32.totalorder %s71, 0
    %s74 = sadd.s32 %s73, 1
    %s75 = scalar_select %p72, %s73, %s74
    %p78 = pneg %p72
    %p79 = scmp.eq.s32.totalorder %s14, 1
    %p80 = por %p78, %p79
    %p81 = scmp.ne.s32.totalorder %s73, %s76
    %p82 = scmp.eq.s32.totalorder %s14, 0
    %p83 = por %p81, %p82
    %p84 = scmp.ne.s32.totalorder %s73, %s76
    %p85 = scmp.eq.s32.totalorder %s19, 1
    %p86 = por %p84, %p85
    %p87 = scmp.ne.s32.totalorder %s76, %s77
    %p88 = scmp.eq.s32.totalorder %s19, 0
    %p89 = por %p87, %p88
    %p90 = scmp.ne.s32.totalorder %s76, %s77
    %p91 = scmp.eq.s32.totalorder %s20, 1
    %p92 = por %p90, %p91
    %p94 = scmp.ne.s32.totalorder %s77, %s93
    %p95 = scmp.eq.s32.totalorder %s20, 0
    %p96 = por %p94, %p95
    %s98 = sadd.s32 %s97, 1
    %p101 = scmp.eq.s32.totalorder %s14, 1
    %p102 = scmp.ne.s32.totalorder %s97, %s99
    %p103 = scmp.eq.s32.totalorder %s14, 0
    %p104 = por %p102, %p103
    %p105 = scmp.ne.s32.totalorder %s97, %s99
    %p106 = scmp.eq.s32.totalorder %s19, 1
    %p107 = por %p105, %p106
    %p108 = scmp.ne.s32.totalorder %s99, %s100
    %p109 = scmp.eq.s32.totalorder %s19, 0
    %p110 = por %p108, %p109
    %p111 = scmp.ne.s32.totalorder %s99, %s100
    %p112 = scmp.eq.s32.totalorder %s20, 1
    %p113 = por %p111, %p112
    %p115 = scmp.ne.s32.totalorder %s100, %s114
    %p116 = scmp.eq.s32.totalorder %s20, 0
    %p117 = por %p115, %p116
    %s119 = sadd.s32 %s118, 1
    %p122 = scmp.eq.s32.totalorder %s14, 1
    %p123 = scmp.ne.s32.totalorder %s118, %s120
    %p124 = scmp.eq.s32.totalorder %s14, 0
    %p125 = por %p123, %p124
    %p126 = scmp.ne.s32.totalorder %s118, %s120
    %p127 = scmp.eq.s32.totalorder %s19, 1
    %p128 = por %p126, %p127
    %p129 = scmp.ne.s32.totalorder %s120, %s121
    %p130 = scmp.eq.s32.totalorder %s19, 0
    %p131 = por %p129, %p130
    %p132 = scmp.ne.s32.totalorder %s120, %s121
    %p133 = scmp.eq.s32.totalorder %s20, 1
    %p134 = por %p132, %p133
    %p136 = scmp.ne.s32.totalorder %s121, %s135
    %p137 = scmp.eq.s32.totalorder %s20, 0
    %p138 = por %p136, %p137
    %s140 = sadd.s32 %s139, 1
    %p143 = scmp.eq.s32.totalorder %s14, 1
    %p144 = scmp.ne.s32.totalorder %s139, %s141
    %p145 = scmp.eq.s32.totalorder %s14, 0
    %p146 = por %p144, %p145
    %p147 = scmp.ne.s32.totalorder %s139, %s141
    %p148 = scmp.eq.s32.totalorder %s19, 1
    %p149 = por %p147, %p148
    %p150 = scmp.ne.s32.totalorder %s141, %s142
    %p151 = scmp.eq.s32.totalorder %s19, 0
    %p152 = por %p150, %p151
    %p153 = scmp.ne.s32.totalorder %s141, %s142
    %p154 = scmp.eq.s32.totalorder %s20, 1
    %p155 = por %p153, %p154
    %p157 = scmp.ne.s32.totalorder %s142, %s156
    %p158 = scmp.eq.s32.totalorder %s20, 0
    %p159 = por %p157, %p158
    %s161 = sadd.s32 %s160, 1
    %p164 = scmp.eq.s32.totalorder %s14, 1
    %p165 = scmp.ne.s32.totalorder %s160, %s162
    %p166 = scmp.eq.s32.totalorder %s14, 0
    %p167 = por %p165, %p166
    %p168 = scmp.ne.s32.totalorder %s160, %s162
    %p169 = scmp.eq.s32.totalorder %s19, 1
    %p170 = por %p168, %p169
    %p171 = scmp.ne.s32.totalorder %s162, %s163
    %p172 = scmp.eq.s32.totalorder %s19, 0
    %p173 = por %p171, %p172
    %p174 = scmp.ne.s32.totalorder %s162, %s163
    %p175 = scmp.eq.s32.totalorder %s20, 1
    %p176 = por %p174, %p175
    %p178 = scmp.ne.s32.totalorder %s163, %s177
    %p179 = scmp.eq.s32.totalorder %s20, 0
    %p180 = por %p178, %p179
    %s182 = sadd.s32 %s181, 1
    %p185 = scmp.eq.s32.totalorder %s14, 1
    %p186 = scmp.ne.s32.totalorder %s181, %s183
    %p187 = scmp.eq.s32.totalorder %s14, 0
    %p188 = por %p186, %p187
    %p189 = scmp.ne.s32.totalorder %s181, %s183
    %p190 = scmp.eq.s32.totalorder %s19, 1
    %p191 = por %p189, %p190
    %p192 = scmp.ne.s32.totalorder %s183, %s184
    %p193 = scmp.eq.s32.totalorder %s19, 0
    %p194 = por %p192, %p193
    %p195 = scmp.ne.s32.totalorder %s183, %s184
    %p196 = scmp.eq.s32.totalorder %s20, 1
    %p197 = por %p195, %p196
    %p199 = scmp.ne.s32.totalorder %s184, %s198
    %p200 = scmp.eq.s32.totalorder %s20, 0
    %p201 = por %p199, %p200
    %s203 = sadd.s32 %s202, 1
    %p206 = scmp.eq.s32.totalorder %s14, 1
    %p207 = scmp.ne.s32.totalorder %s202, %s204
    %p208 = scmp.eq.s32.totalorder %s14, 0
    %p209 = por %p207, %p208
    %p210 = scmp.ne.s32.totalorder %s202, %s204
    %p211 = scmp.eq.s32.totalorder %s19, 1
    %p212 = por %p210, %p211
    %p213 = scmp.ne.s32.totalorder %s204, %s205
    %p214 = scmp.eq.s32.totalorder %s19, 0
    %p215 = por %p213, %p214
    %p216 = scmp.ne.s32.totalorder %s204, %s205
    %p217 = scmp.eq.s32.totalorder %s20, 1
    %p218 = por %p216, %p217
    %p220 = scmp.ne.s32.totalorder %s205, %s219
    %p221 = scmp.eq.s32.totalorder %s20, 0
    %p222 = por %p220, %p221
    %s223 = ssub.s32 %s21, %s40
    %s224 = ssub.s32 %s22, %s36
    %s225 = sor.u32 %s223, %s224
    %p226 = scmp.eq.s32.totalorder %s225, 0
    %s228 = sadd.s32 %s227, 1
    %s229 = scalar_select %p226, %s227, %s228
    %p232 = pneg %p226
    %p233 = scmp.eq.s32.totalorder %s14, 1
    %p234 = por %p232, %p233
    %p235 = scmp.ne.s32.totalorder %s227, %s230
    %p236 = scmp.eq.s32.totalorder %s14, 0
    %p237 = por %p235, %p236
    %p238 = scmp.ne.s32.totalorder %s227, %s230
    %p239 = scmp.eq.s32.totalorder %s19, 1
    %p240 = por %p238, %p239
    %p241 = scmp.ne.s32.totalorder %s230, %s231
    %p242 = scmp.eq.s32.totalorder %s19, 0
    %p243 = por %p241, %p242
    %p244 = scmp.ne.s32.totalorder %s230, %s231
    %p245 = scmp.eq.s32.totalorder %s20, 1
    %p246 = por %p244, %p245
    %p248 = scmp.ne.s32.totalorder %s231, %s247
    %p249 = scmp.eq.s32.totalorder %s20, 0
    %p250 = por %p248, %p249
    %p251 = scmp.le.s32.totalorder 1, %s14
    %p252 = scmp.lt.s32.totalorder %s14, 3
    %p253 = pnand %p251, %p252
    %p254 = pneg %p253
    // Predicated region
    $region9: #{pointnetv3_treg_forward.1} parent=5 // pred_check
      _
    $region10: #{pointnetv3_treg_forward.1} parent=5 // pred_check_branch
      %256 = sbr.rel (%p253) target = $region12
    $region11: #{pointnetv3_treg_forward.1} parent=5 // pred_region
      %s257 = ssub.s32 %s14, 1
      // Predicated region
      $region13: #{pointnetv3_treg_forward.1} parent=11 // pred_check
        %p258 = pneg %p110
      $region14: #{pointnetv3_treg_forward.1} parent=11 // pred_check_branch
        %260 = sbr.rel (%p258) target = $region16
      $region15: #{pointnetv3_treg_forward.1} parent=11 // pred_region
        _
      $region16: #{pointnetv3_treg_forward.1} parent=11 // pred_fallthru
        _
      // Predicated region
      $region17: #{pointnetv3_treg_forward.1} parent=11 // pred_check
        %p261 = pneg %p131
      $region18: #{pointnetv3_treg_forward.1} parent=11 // pred_check_branch
        %263 = sbr.rel (%p261) target = $region20
      $region19: #{pointnetv3_treg_forward.1} parent=11 // pred_region
        _
      $region20: #{pointnetv3_treg_forward.1} parent=11 // pred_fallthru
        _
      // Predicated region
      $region21: #{pointnetv3_treg_forward.1} parent=11 // pred_check
        %p264 = pneg %p152
      $region22: #{pointnetv3_treg_forward.1} parent=11 // pred_check_branch
        %266 = sbr.rel (%p264) target = $region24
      $region23: #{pointnetv3_treg_forward.1} parent=11 // pred_region
        _
      $region24: #{pointnetv3_treg_forward.1} parent=11 // pred_fallthru
        _
      // Predicated region
      $region25: #{pointnetv3_treg_forward.1} parent=11 // pred_check
        %p267 = pneg %p173
      $region26: #{pointnetv3_treg_forward.1} parent=11 // pred_check_branch
        %269 = sbr.rel (%p267) target = $region28
      $region27: #{pointnetv3_treg_forward.1} parent=11 // pred_region
        _
      $region28: #{pointnetv3_treg_forward.1} parent=11 // pred_fallthru
        _
      // Predicated region
      $region29: #{pointnetv3_treg_forward.1} parent=11 // pred_check
        %p270 = pneg %p194
      $region30: #{pointnetv3_treg_forward.1} parent=11 // pred_check_branch
        %272 = sbr.rel (%p270) target = $region32
      $region31: #{pointnetv3_treg_forward.1} parent=11 // pred_region
        _
      $region32: #{pointnetv3_treg_forward.1} parent=11 // pred_fallthru
        _
      // Predicated region
      $region33: #{pointnetv3_treg_forward.1} parent=11 // pred_check
        %p273 = pneg %p215
      $region34: #{pointnetv3_treg_forward.1} parent=11 // pred_check_branch
        %275 = sbr.rel (%p273) target = $region36
      $region35: #{pointnetv3_treg_forward.1} parent=11 // pred_region
        _
      $region36: #{pointnetv3_treg_forward.1} parent=11 // pred_fallthru
        _
    $region12: #{pointnetv3_treg_forward.1} parent=5 // pred_fallthru
      _
    %p276 = scmp.lt.s32.totalorder %s14, 2
    // Predicated region
    $region37: #{pointnetv3_treg_forward.1} parent=5 // pred_check
      %p277 = pneg %p276
    $region38: #{pointnetv3_treg_forward.1} parent=5 // pred_check_branch
      %279 = sbr.rel (%p277) target = $region40
    $region39: #{pointnetv3_treg_forward.1} parent=5 // pred_region
      // Predicated region
      $region41: #{pointnetv3_treg_forward.1} parent=39 // pred_check
        %p280 = pneg %p57
      $region42: #{pointnetv3_treg_forward.1} parent=39 // pred_check_branch
        %282 = sbr.rel (%p280) target = $region44
      $region43: #{pointnetv3_treg_forward.1} parent=39 // pred_region
        %s283 = sadd.s32 %s22, %s23
        %s284 = smul.u32 16, %s283
        %p285 = scmp.lt.s32.totalorder %s21, 1
        %s286 = scalar_select %p285, %s21, 1
        %p287 = scmp.lt.s32.totalorder %s284, 15
        %s288 = scalar_select %p287, %s284, 15
        %s289 = smul.addr %s286, 16
        %s290 = sadd.s32 %s288, %s289
        %s291 = smul.addr %s290, 8
        %s292 = scalar_lea.vmem %s0, %s291
        %s293 = sadd.s32 %s22, %s23
        %s294 = smul.u32 16, %s293
      $region44: #{pointnetv3_treg_forward.1} parent=39 // pred_fallthru
        _
      // Predicated region
      $region45: #{pointnetv3_treg_forward.1} parent=39 // pred_check
        %p295 = pneg %p83
      $region46: #{pointnetv3_treg_forward.1} parent=39 // pred_check_branch
        %297 = sbr.rel (%p295) target = $region48
      $region47: #{pointnetv3_treg_forward.1} parent=39 // pred_region
        %p298 = scmp.lt.s32.totalorder %s21, 1
        %s299 = scalar_select %p298, %s21, 1
        %s300 = smul.addr %s299, 4
        %s301 = scalar_lea.vmem %s1, %s300
      $region48: #{pointnetv3_treg_forward.1} parent=39 // pred_fallthru
        _
    $region40: #{pointnetv3_treg_forward.1} parent=5 // pred_fallthru
      _
    %p302 = scmp.le.s32.totalorder 1, %s14
    %p303 = scmp.lt.s32.totalorder %s14, 3
    %p304 = pnand %p302, %p303
    %p305 = pneg %p304
    // Predicated region
    $region49: #{pointnetv3_treg_forward.1} parent=5 // pred_check
      _
    $region50: #{pointnetv3_treg_forward.1} parent=5 // pred_check_branch
      %307 = sbr.rel (%p304) target = $region52
    $region51: #{pointnetv3_treg_forward.1} parent=5 // pred_region
      %s308 = ssub.s32 %s14, 1
      %s309 = sadd.s32 %s25, %s26
      %s310 = smul.u32 16, %s309
      %p311 = scmp.lt.s32.totalorder %s24, 1
      %s312 = scalar_select %p311, %s24, 1
      %p313 = scmp.lt.s32.totalorder %s310, 15
      %s314 = scalar_select %p313, %s310, 15
      %s315 = smul.addr %s312, 16
      %s316 = sadd.s32 %s314, %s315
      %s317 = smul.addr %s316, 8
      %s318 = scalar_lea.vmem %s0, %s317
      %p319 = pneg %p63
      %p320 = pneg %p60
      %p321 = scmp.lt.s32.totalorder %s24, 1
      %s322 = scalar_select %p321, %s24, 1
      %s323 = smul.addr %s322, 4
      %s324 = scalar_lea.vmem %s1, %s323
      %p325 = pneg %p89
      %p326 = pneg %p86
      %p327 = pneg %p110
      %p328 = pneg %p107
      %p329 = pneg %p131
      %p330 = pneg %p128
      %p331 = pneg %p152
      %p332 = pneg %p149
      %p333 = pneg %p173
      %p334 = pneg %p170
      %p335 = pneg %p194
      %p336 = pneg %p191
      %p337 = pneg %p215
      %p338 = pneg %p212
      %p339 = pneg %p243
      %p340 = pneg %p240
      %p341 = scmp.lt.s32.totalorder %s24, 1
      %s342 = scalar_select %p341, %s24, 1
      %p343 = scmp.lt.s32.totalorder %s25, 0
      %s344 = scalar_select %p343, %s25, 0
      %s345 = smul.addr %s344, 4
      %s346 = smul.addr %s342, 4
      %s347 = sadd.s32 %s345, %s346
      %s348 = scalar_lea.vmem %s8, %s347
      %s349 = sadd.s32 %s25, %s26
      %s350 = smul.u32 16, %s349
      %p351 = scmp.lt.s32.totalorder %s24, 1
      %s352 = scalar_select %p351, %s24, 1
      %p353 = scmp.lt.s32.totalorder %s350, 15
      %s354 = scalar_select %p353, %s350, 15
      %s355 = smul.addr %s352, 16
      %s356 = sadd.s32 %s354, %s355
      %s357 = smul.addr %s356, 8
      %s358 = scalar_lea.vmem %s0, %s357
      %s359 = sadd.s32 %s25, %s26
      %s360 = smul.u32 16, %s359
      %p361 = scmp.lt.s32.totalorder %s24, 1
      %s362 = scalar_select %p361, %s24, 1
      %s363 = smul.addr %s362, 4
      %s364 = scalar_lea.vmem %s1, %s363
      %p365 = scmp.lt.s32.totalorder %s24, 1
      %s366 = scalar_select %p365, %s24, 1
      %p367 = scmp.lt.s32.totalorder %s25, 0
      %s368 = scalar_select %p367, %s25, 0
      %s369 = smul.addr %s368, 4
      %s370 = smul.addr %s366, 4
      %s371 = sadd.s32 %s369, %s370
      %s372 = scalar_lea.vmem %s8, %s371
      %p374 = scmp.eq.s32.totalorder %s26, 0
      // Predicated region
      $region53: #{pointnetv3_treg_forward.1} parent=51 // pred_check
        %p375 = pneg %p374
      $region54: #{pointnetv3_treg_forward.1} parent=51 // pred_check_branch
        %377 = sbr.rel (%p375) target = $region56
      $region55: #{pointnetv3_treg_forward.1} parent=51 // pred_region
        %v378 = vlaneseq
        %vm379 = vcmp.ge.s32.totalorder %v378, 0
        %vm380 = vcmp.lt.s32.totalorder %v378, 512
        %vm381 = vmand %vm379, %vm380
        %382 = vst.msk [vmem:[%s372] sm:$0xf] %vm381, 0.0
      $region56: #{pointnetv3_treg_forward.1} parent=51 // pred_fallthru
        _
      %v383 = vld [vmem:[%s3] sm:$0x1]
      %v384 = vld [vmem:[%s364] sm:$0x7]
      %v385 = vld [vmem:[%s358] sm:$0xff]
      %v386 = vld [vmem:[%s358 + $0x8] sm:$0xff]
      %v387 = vld [vmem:[%s358 + $0x10] sm:$0xff]
      %v388 = vld [vmem:[%s358 + $0x18] sm:$0xff]
      %v389 = vld [vmem:[%s358 + $0x20] sm:$0xff]
      %v390 = vld [vmem:[%s358 + $0x28] sm:$0xff]
      %v391 = vld [vmem:[%s358 + $0x30] sm:$0xff]
      %v392 = vld [vmem:[%s358 + $0x38] sm:$0xff]
      %v393 = vld [vmem:[%s358 + $0x40] sm:$0xff]
      %v394 = vld [vmem:[%s358 + $0x48] sm:$0xff]
      %v395 = vld [vmem:[%s358 + $0x50] sm:$0xff]
      %v396 = vld [vmem:[%s358 + $0x58] sm:$0xff]
      %v397 = vld [vmem:[%s358 + $0x60] sm:$0xff]
      %v398 = vld [vmem:[%s358 + $0x68] sm:$0xff]
      %v399 = vld [vmem:[%s358 + $0x70] sm:$0xff]
      %v400 = vld [vmem:[%s358 + $0x78] sm:$0xff]
      %402 = vset.pattern.permute.xlu0 0
      %403 = vperm.xlu0 %402, %v385
      %v404 = vpop.permute.xlu0 %403
      %407 = vset.pattern.permute.xlu0 0
      %408 = vperm.xlu0 %407, %v386
      %v409 = vpop.permute.xlu0 %408
      %412 = vset.pattern.permute.xlu0 0
      %413 = vperm.xlu0 %412, %v387
      %v414 = vpop.permute.xlu0 %413
      %417 = vset.pattern.permute.xlu0 0
      %418 = vperm.xlu0 %417, %v388
      %v419 = vpop.permute.xlu0 %418
      %422 = vset.pattern.permute.xlu0 0
      %423 = vperm.xlu0 %422, %v389
      %v424 = vpop.permute.xlu0 %423
      %427 = vset.pattern.permute.xlu0 0
      %428 = vperm.xlu0 %427, %v390
      %v429 = vpop.permute.xlu0 %428
      %432 = vset.pattern.permute.xlu0 0
      %433 = vperm.xlu0 %432, %v391
      %v434 = vpop.permute.xlu0 %433
      %437 = vset.pattern.permute.xlu0 0
      %438 = vperm.xlu0 %437, %v392
      %v439 = vpop.permute.xlu0 %438
      %442 = vset.pattern.permute.xlu0 0
      %443 = vperm.xlu0 %442, %v393
      %v444 = vpop.permute.xlu0 %443
      %447 = vset.pattern.permute.xlu0 0
      %448 = vperm.xlu0 %447, %v394
      %v449 = vpop.permute.xlu0 %448
      %452 = vset.pattern.permute.xlu0 0
      %453 = vperm.xlu0 %452, %v395
      %v454 = vpop.permute.xlu0 %453
      %457 = vset.pattern.permute.xlu0 0
      %458 = vperm.xlu0 %457, %v396
      %v459 = vpop.permute.xlu0 %458
      %462 = vset.pattern.permute.xlu0 0
      %463 = vperm.xlu0 %462, %v397
      %v464 = vpop.permute.xlu0 %463
      %467 = vset.pattern.permute.xlu0 0
      %468 = vperm.xlu0 %467, %v398
      %v469 = vpop.permute.xlu0 %468
      %472 = vset.pattern.permute.xlu0 0
      %473 = vperm.xlu0 %472, %v399
      %v474 = vpop.permute.xlu0 %473
      %477 = vset.pattern.permute.xlu0 0
      %478 = vperm.xlu0 %477, %v400
      %v479 = vpop.permute.xlu0 %478
      %v481 = vlaneseq
      %v482 = vshrl.u32 %v481, 7
      %v483 = vsub.s32 0, %v482
      %v484 = vrot.slane %v384, %v483
      %v485 = vmul.f32 %v404, %v484
      %v486 = vmul.f32 %v409, %v484
      %v487 = vmul.f32 %v414, %v484
      %v488 = vmul.f32 %v419, %v484
      %v489 = vmul.f32 %v424, %v484
      %v490 = vmul.f32 %v429, %v484
      %v491 = vmul.f32 %v434, %v484
      %v492 = vmul.f32 %v439, %v484
      %v493 = vmul.f32 %v444, %v484
      %v494 = vmul.f32 %v449, %v484
      %v495 = vmul.f32 %v454, %v484
      %v496 = vmul.f32 %v459, %v484
      %v497 = vmul.f32 %v464, %v484
      %v498 = vmul.f32 %v469, %v484
      %v499 = vmul.f32 %v474, %v484
      %v500 = vmul.f32 %v479, %v484
      %501 = vset.pattern.permute.xlu0 1
      %502 = vperm.xlu0 %501, %v385
      %v503 = vpop.permute.xlu0 %502
      %505 = vset.pattern.permute.xlu0 1
      %506 = vperm.xlu0 %505, %v386
      %v507 = vpop.permute.xlu0 %506
      %509 = vset.pattern.permute.xlu0 1
      %510 = vperm.xlu0 %509, %v387
      %v511 = vpop.permute.xlu0 %510
      %513 = vset.pattern.permute.xlu0 1
      %514 = vperm.xlu0 %513, %v388
      %v515 = vpop.permute.xlu0 %514
      %517 = vset.pattern.permute.xlu0 1
      %518 = vperm.xlu0 %517, %v389
      %v519 = vpop.permute.xlu0 %518
      %521 = vset.pattern.permute.xlu0 1
      %522 = vperm.xlu0 %521, %v390
      %v523 = vpop.permute.xlu0 %522
      %525 = vset.pattern.permute.xlu0 1
      %526 = vperm.xlu0 %525, %v391
      %v527 = vpop.permute.xlu0 %526
      %529 = vset.pattern.permute.xlu0 1
      %530 = vperm.xlu0 %529, %v392
      %v531 = vpop.permute.xlu0 %530
      %533 = vset.pattern.permute.xlu0 1
      %534 = vperm.xlu0 %533, %v393
      %v535 = vpop.permute.xlu0 %534
      %537 = vset.pattern.permute.xlu0 1
      %538 = vperm.xlu0 %537, %v394
      %v539 = vpop.permute.xlu0 %538
      %541 = vset.pattern.permute.xlu0 1
      %542 = vperm.xlu0 %541, %v395
      %v543 = vpop.permute.xlu0 %542
      %545 = vset.pattern.permute.xlu0 1
      %546 = vperm.xlu0 %545, %v396
      %v547 = vpop.permute.xlu0 %546
      %549 = vset.pattern.permute.xlu0 1
      %550 = vperm.xlu0 %549, %v397
      %v551 = vpop.permute.xlu0 %550
      %553 = vset.pattern.permute.xlu0 1
      %554 = vperm.xlu0 %553, %v398
      %v555 = vpop.permute.xlu0 %554
      %557 = vset.pattern.permute.xlu0 1
      %558 = vperm.xlu0 %557, %v399
      %v559 = vpop.permute.xlu0 %558
      %561 = vset.pattern.permute.xlu0 1
      %562 = vperm.xlu0 %561, %v400
      %v563 = vpop.permute.xlu0 %562
      %v565 = vlaneseq
      %v566 = vshrl.u32 %v565, 7
      %v567 = vsub.s32 1, %v566
      %v568 = vrot.slane %v384, %v567
      %v569 = vmul.f32 %v503, %v568
      %v570 = vmul.f32 %v507, %v568
      %v571 = vmul.f32 %v511, %v568
      %v572 = vmul.f32 %v515, %v568
      %v573 = vmul.f32 %v519, %v568
      %v574 = vmul.f32 %v523, %v568
      %v575 = vmul.f32 %v527, %v568
      %v576 = vmul.f32 %v531, %v568
      %v577 = vmul.f32 %v535, %v568
      %v578 = vmul.f32 %v539, %v568
      %v579 = vmul.f32 %v543, %v568
      %v580 = vmul.f32 %v547, %v568
      %v581 = vmul.f32 %v551, %v568
      %v582 = vmul.f32 %v555, %v568
      %v583 = vmul.f32 %v559, %v568
      %v584 = vmul.f32 %v563, %v568
      %v585 = vadd.f32 %v485, %v569
      %v586 = vadd.f32 %v486, %v570
      %v587 = vadd.f32 %v487, %v571
      %v588 = vadd.f32 %v488, %v572
      %v589 = vadd.f32 %v489, %v573
      %v590 = vadd.f32 %v490, %v574
      %v591 = vadd.f32 %v491, %v575
      %v592 = vadd.f32 %v492, %v576
      %v593 = vadd.f32 %v493, %v577
      %v594 = vadd.f32 %v494, %v578
      %v595 = vadd.f32 %v495, %v579
      %v596 = vadd.f32 %v496, %v580
      %v597 = vadd.f32 %v497, %v581
      %v598 = vadd.f32 %v498, %v582
      %v599 = vadd.f32 %v499, %v583
      %v600 = vadd.f32 %v500, %v584
      %601 = vset.pattern.permute.xlu0 2
      %602 = vperm.xlu0 %601, %v385
      %v603 = vpop.permute.xlu0 %602
      %605 = vset.pattern.permute.xlu0 2
      %606 = vperm.xlu0 %605, %v386
      %v607 = vpop.permute.xlu0 %606
      %609 = vset.pattern.permute.xlu0 2
      %610 = vperm.xlu0 %609, %v387
      %v611 = vpop.permute.xlu0 %610
      %613 = vset.pattern.permute.xlu0 2
      %614 = vperm.xlu0 %613, %v388
      %v615 = vpop.permute.xlu0 %614
      %617 = vset.pattern.permute.xlu0 2
      %618 = vperm.xlu0 %617, %v389
      %v619 = vpop.permute.xlu0 %618
      %621 = vset.pattern.permute.xlu0 2
      %622 = vperm.xlu0 %621, %v390
      %v623 = vpop.permute.xlu0 %622
      %625 = vset.pattern.permute.xlu0 2
      %626 = vperm.xlu0 %625, %v391
      %v627 = vpop.permute.xlu0 %626
      %629 = vset.pattern.permute.xlu0 2
      %630 = vperm.xlu0 %629, %v392
      %v631 = vpop.permute.xlu0 %630
      %633 = vset.pattern.permute.xlu0 2
      %634 = vperm.xlu0 %633, %v393
      %v635 = vpop.permute.xlu0 %634
      %637 = vset.pattern.permute.xlu0 2
      %638 = vperm.xlu0 %637, %v394
      %v639 = vpop.permute.xlu0 %638
      %641 = vset.pattern.permute.xlu0 2
      %642 = vperm.xlu0 %641, %v395
      %v643 = vpop.permute.xlu0 %642
      %645 = vset.pattern.permute.xlu0 2
      %646 = vperm.xlu0 %645, %v396
      %v647 = vpop.permute.xlu0 %646
      %649 = vset.pattern.permute.xlu0 2
      %650 = vperm.xlu0 %649, %v397
      %v651 = vpop.permute.xlu0 %650
      %653 = vset.pattern.permute.xlu0 2
      %654 = vperm.xlu0 %653, %v398
      %v655 = vpop.permute.xlu0 %654
      %657 = vset.pattern.permute.xlu0 2
      %658 = vperm.xlu0 %657, %v399
      %v659 = vpop.permute.xlu0 %658
      %661 = vset.pattern.permute.xlu0 2
      %662 = vperm.xlu0 %661, %v400
      %v663 = vpop.permute.xlu0 %662
      %v665 = vlaneseq
      %v666 = vshrl.u32 %v665, 7
      %v667 = vsub.s32 2, %v666
      %v668 = vrot.slane %v384, %v667
      %v669 = vmul.f32 %v603, %v668
      %v670 = vmul.f32 %v607, %v668
      %v671 = vmul.f32 %v611, %v668
      %v672 = vmul.f32 %v615, %v668
      %v673 = vmul.f32 %v619, %v668
      %v674 = vmul.f32 %v623, %v668
      %v675 = vmul.f32 %v627, %v668
      %v676 = vmul.f32 %v631, %v668
      %v677 = vmul.f32 %v635, %v668
      %v678 = vmul.f32 %v639, %v668
      %v679 = vmul.f32 %v643, %v668
      %v680 = vmul.f32 %v647, %v668
      %v681 = vmul.f32 %v651, %v668
      %v682 = vmul.f32 %v655, %v668
      %v683 = vmul.f32 %v659, %v668
      %v684 = vmul.f32 %v663, %v668
      %v685 = vadd.f32 %v585, %v669
      %v686 = vadd.f32 %v586, %v670
      %v687 = vadd.f32 %v587, %v671
      %v688 = vadd.f32 %v588, %v672
      %v689 = vadd.f32 %v589, %v673
      %v690 = vadd.f32 %v590, %v674
      %v691 = vadd.f32 %v591, %v675
      %v692 = vadd.f32 %v592, %v676
      %v693 = vadd.f32 %v593, %v677
      %v694 = vadd.f32 %v594, %v678
      %v695 = vadd.f32 %v595, %v679
      %v696 = vadd.f32 %v596, %v680
      %v697 = vadd.f32 %v597, %v681
      %v698 = vadd.f32 %v598, %v682
      %v699 = vadd.f32 %v599, %v683
      %v700 = vadd.f32 %v600, %v684
      %v702 = vlaneseq
      %v703 = vshrl.u32 %v702, 7
      %v704 = vsub.s32 0, %v703
      %v705 = vrot.slane %v383, %v704
      %v707 = vadd.f32 %v685, %v705
      %v708 = vadd.f32 %v686, %v705
      %v709 = vadd.f32 %v687, %v705
      %v710 = vadd.f32 %v688, %v705
      %v711 = vadd.f32 %v689, %v705
      %v712 = vadd.f32 %v690, %v705
      %v713 = vadd.f32 %v691, %v705
      %v714 = vadd.f32 %v692, %v705
      %v715 = vadd.f32 %v693, %v705
      %v716 = vadd.f32 %v694, %v705
      %v717 = vadd.f32 %v695, %v705
      %v718 = vadd.f32 %v696, %v705
      %v719 = vadd.f32 %v697, %v705
      %v720 = vadd.f32 %v698, %v705
      %v721 = vadd.f32 %v699, %v705
      %v722 = vadd.f32 %v700, %v705
      %v723 = vmax.f32 %v707, 0.0
      %v724 = vmax.f32 %v708, 0.0
      %v725 = vmax.f32 %v709, 0.0
      %v726 = vmax.f32 %v710, 0.0
      %v727 = vmax.f32 %v711, 0.0
      %v728 = vmax.f32 %v712, 0.0
      %v729 = vmax.f32 %v713, 0.0
      %v730 = vmax.f32 %v714, 0.0
      %v731 = vmax.f32 %v715, 0.0
      %v732 = vmax.f32 %v716, 0.0
      %v733 = vmax.f32 %v717, 0.0
      %v734 = vmax.f32 %v718, 0.0
      %v735 = vmax.f32 %v719, 0.0
      %v736 = vmax.f32 %v720, 0.0
      %v737 = vmax.f32 %v721, 0.0
      %v738 = vmax.f32 %v722, 0.0
      %v739 = vpack.c.bf16 %v724, %v723
      %v740 = vpack.c.bf16 %v726, %v725
      %v741 = vpack.c.bf16 %v728, %v727
      %v742 = vpack.c.bf16 %v730, %v729
      %v743 = vpack.c.bf16 %v732, %v731
      %v744 = vpack.c.bf16 %v734, %v733
      %v745 = vpack.c.bf16 %v736, %v735
      %v746 = vpack.c.bf16 %v738, %v737
      %v755 = vunpack.c.l.b16 %v739
      %v756 = vunpack.c.h.b16 %v739
      %v757 = vunpack.c.l.b16 %v740
      %v758 = vunpack.c.h.b16 %v740
      %v759 = vunpack.c.l.b16 %v741
      %v760 = vunpack.c.h.b16 %v741
      %v761 = vunpack.c.l.b16 %v742
      %v762 = vunpack.c.h.b16 %v742
      %v763 = vunpack.c.l.b16 %v743
      %v764 = vunpack.c.h.b16 %v743
      %v765 = vunpack.c.l.b16 %v744
      %v766 = vunpack.c.h.b16 %v744
      %v767 = vunpack.c.l.b16 %v745
      %v768 = vunpack.c.h.b16 %v745
      %v769 = vunpack.c.l.b16 %v746
      %v770 = vunpack.c.h.b16 %v746
      %v771 = vpack.c.b16 %v755, %v755
      %v772 = vpack.c.b16 %v756, %v756
      %v773 = vpack.c.b16 %v757, %v757
      %v774 = vpack.c.b16 %v758, %v758
      %v775 = vpack.c.b16 %v759, %v759
      %v776 = vpack.c.b16 %v760, %v760
      %v777 = vpack.c.b16 %v761, %v761
      %v778 = vpack.c.b16 %v762, %v762
      %v779 = vpack.c.b16 %v763, %v763
      %v780 = vpack.c.b16 %v764, %v764
      %v781 = vpack.c.b16 %v765, %v765
      %v782 = vpack.c.b16 %v766, %v766
      %v783 = vpack.c.b16 %v767, %v767
      %v784 = vpack.c.b16 %v768, %v768
      %v785 = vpack.c.b16 %v769, %v769
      %v786 = vpack.c.b16 %v770, %v770
      %vm803 = vcmask 519168
      %804 = vst.msk [vmem:[#allocation2] sm:$0xf] %vm803, %v771
      %805 = vst.msk [vmem:[#allocation2 + $0x4] sm:$0xf] %vm803, %v772
      %806 = vst.msk [vmem:[#allocation2 + $0x8] sm:$0xf] %vm803, %v773
      %807 = vst.msk [vmem:[#allocation2 + $0xc] sm:$0xf] %vm803, %v774
      %808 = vst.msk [vmem:[#allocation2 + $0x10] sm:$0xf] %vm803, %v775
      %809 = vst.msk [vmem:[#allocation2 + $0x14] sm:$0xf] %vm803, %v776
      %810 = vst.msk [vmem:[#allocation2 + $0x18] sm:$0xf] %vm803, %v777
      %811 = vst.msk [vmem:[#allocation2 + $0x1c] sm:$0xf] %vm803, %v778
      %812 = vst.msk [vmem:[#allocation2 + $0x20] sm:$0xf] %vm803, %v779
      %813 = vst.msk [vmem:[#allocation2 + $0x24] sm:$0xf] %vm803, %v780
      %814 = vst.msk [vmem:[#allocation2 + $0x28] sm:$0xf] %vm803, %v781
      %815 = vst.msk [vmem:[#allocation2 + $0x2c] sm:$0xf] %vm803, %v782
      %816 = vst.msk [vmem:[#allocation2 + $0x30] sm:$0xf] %vm803, %v783
      %817 = vst.msk [vmem:[#allocation2 + $0x34] sm:$0xf] %vm803, %v784
      %818 = vst.msk [vmem:[#allocation2 + $0x38] sm:$0xf] %vm803, %v785
      %819 = vst.msk [vmem:[#allocation2 + $0x3c] sm:$0xf] %vm803, %v786
      %v820 = vld [vmem:[%s2] sm:$0x7]
      %v821 = vld [vmem:[%s358] sm:$0xff]
      %v822 = vld [vmem:[%s358 + $0x8] sm:$0xff]
      %v823 = vld [vmem:[%s358 + $0x10] sm:$0xff]
      %v824 = vld [vmem:[%s358 + $0x18] sm:$0xff]
      %v825 = vld [vmem:[%s358 + $0x20] sm:$0xff]
      %v826 = vld [vmem:[%s358 + $0x28] sm:$0xff]
      %v827 = vld [vmem:[%s358 + $0x30] sm:$0xff]
      %v828 = vld [vmem:[%s358 + $0x38] sm:$0xff]
      %v829 = vld [vmem:[%s358 + $0x40] sm:$0xff]
      %v830 = vld [vmem:[%s358 + $0x48] sm:$0xff]
      %v831 = vld [vmem:[%s358 + $0x50] sm:$0xff]
      %v832 = vld [vmem:[%s358 + $0x58] sm:$0xff]
      %v833 = vld [vmem:[%s358 + $0x60] sm:$0xff]
      %v834 = vld [vmem:[%s358 + $0x68] sm:$0xff]
      %v835 = vld [vmem:[%s358 + $0x70] sm:$0xff]
      %v836 = vld [vmem:[%s358 + $0x78] sm:$0xff]
      %838 = vset.pattern.permute.xlu0 3
      %839 = vperm.xlu0 %838, %v821
      %v840 = vpop.permute.xlu0 %839
      %843 = vset.pattern.permute.xlu0 3
      %844 = vperm.xlu0 %843, %v822
      %v845 = vpop.permute.xlu0 %844
      %848 = vset.pattern.permute.xlu0 3
      %849 = vperm.xlu0 %848, %v823
      %v850 = vpop.permute.xlu0 %849
      %853 = vset.pattern.permute.xlu0 3
      %854 = vperm.xlu0 %853, %v824
      %v855 = vpop.permute.xlu0 %854
      %858 = vset.pattern.permute.xlu0 3
      %859 = vperm.xlu0 %858, %v825
      %v860 = vpop.permute.xlu0 %859
      %863 = vset.pattern.permute.xlu0 3
      %864 = vperm.xlu0 %863, %v826
      %v865 = vpop.permute.xlu0 %864
      %868 = vset.pattern.permute.xlu0 3
      %869 = vperm.xlu0 %868, %v827
      %v870 = vpop.permute.xlu0 %869
      %873 = vset.pattern.permute.xlu0 3
      %874 = vperm.xlu0 %873, %v828
      %v875 = vpop.permute.xlu0 %874
      %878 = vset.pattern.permute.xlu0 3
      %879 = vperm.xlu0 %878, %v829
      %v880 = vpop.permute.xlu0 %879
      %883 = vset.pattern.permute.xlu0 3
      %884 = vperm.xlu0 %883, %v830
      %v885 = vpop.permute.xlu0 %884
      %888 = vset.pattern.permute.xlu0 3
      %889 = vperm.xlu0 %888, %v831
      %v890 = vpop.permute.xlu0 %889
      %893 = vset.pattern.permute.xlu0 3
      %894 = vperm.xlu0 %893, %v832
      %v895 = vpop.permute.xlu0 %894
      %898 = vset.pattern.permute.xlu0 3
      %899 = vperm.xlu0 %898, %v833
      %v900 = vpop.permute.xlu0 %899
      %903 = vset.pattern.permute.xlu0 3
      %904 = vperm.xlu0 %903, %v834
      %v905 = vpop.permute.xlu0 %904
      %908 = vset.pattern.permute.xlu0 3
      %909 = vperm.xlu0 %908, %v835
      %v910 = vpop.permute.xlu0 %909
      %913 = vset.pattern.permute.xlu0 3
      %914 = vperm.xlu0 %913, %v836
      %v915 = vpop.permute.xlu0 %914
      %v917 = vlaneseq
      %v918 = vshrl.u32 %v917, 7
      %v919 = vsub.s32 0, %v918
      %v920 = vrot.slane %v820, %v919
      %v921 = vmul.f32 %v840, %v920
      %v922 = vmul.f32 %v845, %v920
      %v923 = vmul.f32 %v850, %v920
      %v924 = vmul.f32 %v855, %v920
      %v925 = vmul.f32 %v860, %v920
      %v926 = vmul.f32 %v865, %v920
      %v927 = vmul.f32 %v870, %v920
      %v928 = vmul.f32 %v875, %v920
      %v929 = vmul.f32 %v880, %v920
      %v930 = vmul.f32 %v885, %v920
      %v931 = vmul.f32 %v890, %v920
      %v932 = vmul.f32 %v895, %v920
      %v933 = vmul.f32 %v900, %v920
      %v934 = vmul.f32 %v905, %v920
      %v935 = vmul.f32 %v910, %v920
      %v936 = vmul.f32 %v915, %v920
      %937 = vset.pattern.permute.xlu0 4
      %938 = vperm.xlu0 %937, %v821
      %v939 = vpop.permute.xlu0 %938
      %941 = vset.pattern.permute.xlu0 4
      %942 = vperm.xlu0 %941, %v822
      %v943 = vpop.permute.xlu0 %942
      %945 = vset.pattern.permute.xlu0 4
      %946 = vperm.xlu0 %945, %v823
      %v947 = vpop.permute.xlu0 %946
      %949 = vset.pattern.permute.xlu0 4
      %950 = vperm.xlu0 %949, %v824
      %v951 = vpop.permute.xlu0 %950
      %953 = vset.pattern.permute.xlu0 4
      %954 = vperm.xlu0 %953, %v825
      %v955 = vpop.permute.xlu0 %954
      %957 = vset.pattern.permute.xlu0 4
      %958 = vperm.xlu0 %957, %v826
      %v959 = vpop.permute.xlu0 %958
      %961 = vset.pattern.permute.xlu0 4
      %962 = vperm.xlu0 %961, %v827
      %v963 = vpop.permute.xlu0 %962
      %965 = vset.pattern.permute.xlu0 4
      %966 = vperm.xlu0 %965, %v828
      %v967 = vpop.permute.xlu0 %966
      %969 = vset.pattern.permute.xlu0 4
      %970 = vperm.xlu0 %969, %v829
      %v971 = vpop.permute.xlu0 %970
      %973 = vset.pattern.permute.xlu0 4
      %974 = vperm.xlu0 %973, %v830
      %v975 = vpop.permute.xlu0 %974
      %977 = vset.pattern.permute.xlu0 4
      %978 = vperm.xlu0 %977, %v831
      %v979 = vpop.permute.xlu0 %978
      %981 = vset.pattern.permute.xlu0 4
      %982 = vperm.xlu0 %981, %v832
      %v983 = vpop.permute.xlu0 %982
      %985 = vset.pattern.permute.xlu0 4
      %986 = vperm.xlu0 %985, %v833
      %v987 = vpop.permute.xlu0 %986
      %989 = vset.pattern.permute.xlu0 4
      %990 = vperm.xlu0 %989, %v834
      %v991 = vpop.permute.xlu0 %990
      %993 = vset.pattern.permute.xlu0 4
      %994 = vperm.xlu0 %993, %v835
      %v995 = vpop.permute.xlu0 %994
      %997 = vset.pattern.permute.xlu0 4
      %998 = vperm.xlu0 %997, %v836
      %v999 = vpop.permute.xlu0 %998
      %v1001 = vlaneseq
      %v1002 = vshrl.u32 %v1001, 7
      %v1003 = vsub.s32 1, %v1002
      %v1004 = vrot.slane %v820, %v1003
      %v1005 = vmul.f32 %v939, %v1004
      %v1006 = vmul.f32 %v943, %v1004
      %v1007 = vmul.f32 %v947, %v1004
      %v1008 = vmul.f32 %v951, %v1004
      %v1009 = vmul.f32 %v955, %v1004
      %v1010 = vmul.f32 %v959, %v1004
      %v1011 = vmul.f32 %v963, %v1004
      %v1012 = vmul.f32 %v967, %v1004
      %v1013 = vmul.f32 %v971, %v1004
      %v1014 = vmul.f32 %v975, %v1004
      %v1015 = vmul.f32 %v979, %v1004
      %v1016 = vmul.f32 %v983, %v1004
      %v1017 = vmul.f32 %v987, %v1004
      %v1018 = vmul.f32 %v991, %v1004
      %v1019 = vmul.f32 %v995, %v1004
      %v1020 = vmul.f32 %v999, %v1004
      %v1021 = vadd.f32 %v921, %v1005
      %v1022 = vadd.f32 %v922, %v1006
      %v1023 = vadd.f32 %v923, %v1007
      %v1024 = vadd.f32 %v924, %v1008
      %v1025 = vadd.f32 %v925, %v1009
      %v1026 = vadd.f32 %v926, %v1010
      %v1027 = vadd.f32 %v927, %v1011
      %v1028 = vadd.f32 %v928, %v1012
      %v1029 = vadd.f32 %v929, %v1013
      %v1030 = vadd.f32 %v930, %v1014
      %v1031 = vadd.f32 %v931, %v1015
      %v1032 = vadd.f32 %v932, %v1016
      %v1033 = vadd.f32 %v933, %v1017
      %v1034 = vadd.f32 %v934, %v1018
      %v1035 = vadd.f32 %v935, %v1019
      %v1036 = vadd.f32 %v936, %v1020
      %1037 = vset.pattern.permute.xlu0 5
      %1038 = vperm.xlu0 %1037, %v821
      %v1039 = vpop.permute.xlu0 %1038
      %1041 = vset.pattern.permute.xlu0 5
      %1042 = vperm.xlu0 %1041, %v822
      %v1043 = vpop.permute.xlu0 %1042
      %1045 = vset.pattern.permute.xlu0 5
      %1046 = vperm.xlu0 %1045, %v823
      %v1047 = vpop.permute.xlu0 %1046
      %1049 = vset.pattern.permute.xlu0 5
      %1050 = vperm.xlu0 %1049, %v824
      %v1051 = vpop.permute.xlu0 %1050
      %1053 = vset.pattern.permute.xlu0 5
      %1054 = vperm.xlu0 %1053, %v825
      %v1055 = vpop.permute.xlu0 %1054
      %1057 = vset.pattern.permute.xlu0 5
      %1058 = vperm.xlu0 %1057, %v826
      %v1059 = vpop.permute.xlu0 %1058
      %1061 = vset.pattern.permute.xlu0 5
      %1062 = vperm.xlu0 %1061, %v827
      %v1063 = vpop.permute.xlu0 %1062
      %1065 = vset.pattern.permute.xlu0 5
      %1066 = vperm.xlu0 %1065, %v828
      %v1067 = vpop.permute.xlu0 %1066
      %1069 = vset.pattern.permute.xlu0 5
      %1070 = vperm.xlu0 %1069, %v829
      %v1071 = vpop.permute.xlu0 %1070
      %1073 = vset.pattern.permute.xlu0 5
      %1074 = vperm.xlu0 %1073, %v830
      %v1075 = vpop.permute.xlu0 %1074
      %1077 = vset.pattern.permute.xlu0 5
      %1078 = vperm.xlu0 %1077, %v831
      %v1079 = vpop.permute.xlu0 %1078
      %1081 = vset.pattern.permute.xlu0 5
      %1082 = vperm.xlu0 %1081, %v832
      %v1083 = vpop.permute.xlu0 %1082
      %1085 = vset.pattern.permute.xlu0 5
      %1086 = vperm.xlu0 %1085, %v833
      %v1087 = vpop.permute.xlu0 %1086
      %1089 = vset.pattern.permute.xlu0 5
      %1090 = vperm.xlu0 %1089, %v834
      %v1091 = vpop.permute.xlu0 %1090
      %1093 = vset.pattern.permute.xlu0 5
      %1094 = vperm.xlu0 %1093, %v835
      %v1095 = vpop.permute.xlu0 %1094
      %1097 = vset.pattern.permute.xlu0 5
      %1098 = vperm.xlu0 %1097, %v836
      %v1099 = vpop.permute.xlu0 %1098
      %v1101 = vlaneseq
      %v1102 = vshrl.u32 %v1101, 7
      %v1103 = vsub.s32 2, %v1102
      %v1104 = vrot.slane %v820, %v1103
      %v1105 = vmul.f32 %v1039, %v1104
      %v1106 = vmul.f32 %v1043, %v1104
      %v1107 = vmul.f32 %v1047, %v1104
      %v1108 = vmul.f32 %v1051, %v1104
      %v1109 = vmul.f32 %v1055, %v1104
      %v1110 = vmul.f32 %v1059, %v1104
      %v1111 = vmul.f32 %v1063, %v1104
      %v1112 = vmul.f32 %v1067, %v1104
      %v1113 = vmul.f32 %v1071, %v1104
      %v1114 = vmul.f32 %v1075, %v1104
      %v1115 = vmul.f32 %v1079, %v1104
      %v1116 = vmul.f32 %v1083, %v1104
      %v1117 = vmul.f32 %v1087, %v1104
      %v1118 = vmul.f32 %v1091, %v1104
      %v1119 = vmul.f32 %v1095, %v1104
      %v1120 = vmul.f32 %v1099, %v1104
      %v1121 = vadd.f32 %v1021, %v1105
      %v1122 = vadd.f32 %v1022, %v1106
      %v1123 = vadd.f32 %v1023, %v1107
      %v1124 = vadd.f32 %v1024, %v1108
      %v1125 = vadd.f32 %v1025, %v1109
      %v1126 = vadd.f32 %v1026, %v1110
      %v1127 = vadd.f32 %v1027, %v1111
      %v1128 = vadd.f32 %v1028, %v1112
      %v1129 = vadd.f32 %v1029, %v1113
      %v1130 = vadd.f32 %v1030, %v1114
      %v1131 = vadd.f32 %v1031, %v1115
      %v1132 = vadd.f32 %v1032, %v1116
      %v1133 = vadd.f32 %v1033, %v1117
      %v1134 = vadd.f32 %v1034, %v1118
      %v1135 = vadd.f32 %v1035, %v1119
      %v1136 = vadd.f32 %v1036, %v1120
      %v1137 = vadd.f32 %v1121, %v705
      %v1138 = vadd.f32 %v1122, %v705
      %v1139 = vadd.f32 %v1123, %v705
      %v1140 = vadd.f32 %v1124, %v705
      %v1141 = vadd.f32 %v1125, %v705
      %v1142 = vadd.f32 %v1126, %v705
      %v1143 = vadd.f32 %v1127, %v705
      %v1144 = vadd.f32 %v1128, %v705
      %v1145 = vadd.f32 %v1129, %v705
      %v1146 = vadd.f32 %v1130, %v705
      %v1147 = vadd.f32 %v1131, %v705
      %v1148 = vadd.f32 %v1132, %v705
      %v1149 = vadd.f32 %v1133, %v705
      %v1150 = vadd.f32 %v1134, %v705
      %v1151 = vadd.f32 %v1135, %v705
      %v1152 = vadd.f32 %v1136, %v705
      %v1153 = vmax.f32 %v1137, 0.0
      %v1154 = vmax.f32 %v1138, 0.0
      %v1155 = vmax.f32 %v1139, 0.0
      %v1156 = vmax.f32 %v1140, 0.0
      %v1157 = vmax.f32 %v1141, 0.0
      %v1158 = vmax.f32 %v1142, 0.0
      %v1159 = vmax.f32 %v1143, 0.0
      %v1160 = vmax.f32 %v1144, 0.0
      %v1161 = vmax.f32 %v1145, 0.0
      %v1162 = vmax.f32 %v1146, 0.0
      %v1163 = vmax.f32 %v1147, 0.0
      %v1164 = vmax.f32 %v1148, 0.0
      %v1165 = vmax.f32 %v1149, 0.0
      %v1166 = vmax.f32 %v1150, 0.0
      %v1167 = vmax.f32 %v1151, 0.0
      %v1168 = vmax.f32 %v1152, 0.0
      %v1169 = vpack.c.bf16 %v1154, %v1153
      %v1170 = vpack.c.bf16 %v1156, %v1155
      %v1171 = vpack.c.bf16 %v1158, %v1157
      %v1172 = vpack.c.bf16 %v1160, %v1159
      %v1173 = vpack.c.bf16 %v1162, %v1161
      %v1174 = vpack.c.bf16 %v1164, %v1163
      %v1175 = vpack.c.bf16 %v1166, %v1165
      %v1176 = vpack.c.bf16 %v1168, %v1167
      %v1185 = vunpack.c.l.b16 %v1169
      %v1186 = vunpack.c.h.b16 %v1169
      %v1187 = vunpack.c.l.b16 %v1170
      %v1188 = vunpack.c.h.b16 %v1170
      %v1189 = vunpack.c.l.b16 %v1171
      %v1190 = vunpack.c.h.b16 %v1171
      %v1191 = vunpack.c.l.b16 %v1172
      %v1192 = vunpack.c.h.b16 %v1172
      %v1193 = vunpack.c.l.b16 %v1173
      %v1194 = vunpack.c.h.b16 %v1173
      %v1195 = vunpack.c.l.b16 %v1174
      %v1196 = vunpack.c.h.b16 %v1174
      %v1197 = vunpack.c.l.b16 %v1175
      %v1198 = vunpack.c.h.b16 %v1175
      %v1199 = vunpack.c.l.b16 %v1176
      %v1200 = vunpack.c.h.b16 %v1176
      %v1201 = vpack.c.b16 %v1185, %v1185
      %v1202 = vpack.c.b16 %v1186, %v1186
      %v1203 = vpack.c.b16 %v1187, %v1187
      %v1204 = vpack.c.b16 %v1188, %v1188
      %v1205 = vpack.c.b16 %v1189, %v1189
      %v1206 = vpack.c.b16 %v1190, %v1190
      %v1207 = vpack.c.b16 %v1191, %v1191
      %v1208 = vpack.c.b16 %v1192, %v1192
      %v1209 = vpack.c.b16 %v1193, %v1193
      %v1210 = vpack.c.b16 %v1194, %v1194
      %v1211 = vpack.c.b16 %v1195, %v1195
      %v1212 = vpack.c.b16 %v1196, %v1196
      %v1213 = vpack.c.b16 %v1197, %v1197
      %v1214 = vpack.c.b16 %v1198, %v1198
      %v1215 = vpack.c.b16 %v1199, %v1199
      %v1216 = vpack.c.b16 %v1200, %v1200
      %1233 = vst.msk [vmem:[#allocation2 + $0x40] sm:$0xf] %vm803, %v1201
      %1234 = vst.msk [vmem:[#allocation2 + $0x44] sm:$0xf] %vm803, %v1202
      %1235 = vst.msk [vmem:[#allocation2 + $0x48] sm:$0xf] %vm803, %v1203
      %1236 = vst.msk [vmem:[#allocation2 + $0x4c] sm:$0xf] %vm803, %v1204
      %1237 = vst.msk [vmem:[#allocation2 + $0x50] sm:$0xf] %vm803, %v1205
      %1238 = vst.msk [vmem:[#allocation2 + $0x54] sm:$0xf] %vm803, %v1206
      %1239 = vst.msk [vmem:[#allocation2 + $0x58] sm:$0xf] %vm803, %v1207
      %1240 = vst.msk [vmem:[#allocation2 + $0x5c] sm:$0xf] %vm803, %v1208
      %1241 = vst.msk [vmem:[#allocation2 + $0x60] sm:$0xf] %vm803, %v1209
      %1242 = vst.msk [vmem:[#allocation2 + $0x64] sm:$0xf] %vm803, %v1210
      %1243 = vst.msk [vmem:[#allocation2 + $0x68] sm:$0xf] %vm803, %v1211
      %1244 = vst.msk [vmem:[#allocation2 + $0x6c] sm:$0xf] %vm803, %v1212
      %1245 = vst.msk [vmem:[#allocation2 + $0x70] sm:$0xf] %vm803, %v1213
      %1246 = vst.msk [vmem:[#allocation2 + $0x74] sm:$0xf] %vm803, %v1214
      %1247 = vst.msk [vmem:[#allocation2 + $0x78] sm:$0xf] %vm803, %v1215
      %1248 = vst.msk [vmem:[#allocation2 + $0x7c] sm:$0xf] %vm803, %v1216
      %v1249 = vld [vmem:[#allocation2] sm:$0xf]
      %v1250 = vld [vmem:[#allocation2 + $0x4] sm:$0xf]
      %v1251 = vld [vmem:[#allocation2 + $0x8] sm:$0xf]
      %v1252 = vld [vmem:[#allocation2 + $0xc] sm:$0xf]
      %v1253 = vld [vmem:[#allocation2 + $0x10] sm:$0xf]
      %v1254 = vld [vmem:[#allocation2 + $0x14] sm:$0xf]
      %v1255 = vld [vmem:[#allocation2 + $0x18] sm:$0xf]
      %v1256 = vld [vmem:[#allocation2 + $0x1c] sm:$0xf]
      %v1257 = vld [vmem:[#allocation2 + $0x20] sm:$0xf]
      %v1258 = vld [vmem:[#allocation2 + $0x24] sm:$0xf]
      %v1259 = vld [vmem:[#allocation2 + $0x28] sm:$0xf]
      %v1260 = vld [vmem:[#allocation2 + $0x2c] sm:$0xf]
      %v1261 = vld [vmem:[#allocation2 + $0x30] sm:$0xf]
      %v1262 = vld [vmem:[#allocation2 + $0x34] sm:$0xf]
      %v1263 = vld [vmem:[#allocation2 + $0x38] sm:$0xf]
      %v1264 = vld [vmem:[#allocation2 + $0x3c] sm:$0xf]
      %v1265 = vld [vmem:[#allocation2 + $0x40] sm:$0xf]
      %v1266 = vld [vmem:[#allocation2 + $0x44] sm:$0xf]
      %v1267 = vld [vmem:[#allocation2 + $0x48] sm:$0xf]
      %v1268 = vld [vmem:[#allocation2 + $0x4c] sm:$0xf]
      %v1269 = vld [vmem:[#allocation2 + $0x50] sm:$0xf]
      %v1270 = vld [vmem:[#allocation2 + $0x54] sm:$0xf]
      %v1271 = vld [vmem:[#allocation2 + $0x58] sm:$0xf]
      %v1272 = vld [vmem:[#allocation2 + $0x5c] sm:$0xf]
      %v1273 = vld [vmem:[#allocation2 + $0x60] sm:$0xf]
      %v1274 = vld [vmem:[#allocation2 + $0x64] sm:$0xf]
      %v1275 = vld [vmem:[#allocation2 + $0x68] sm:$0xf]
      %v1276 = vld [vmem:[#allocation2 + $0x6c] sm:$0xf]
      %v1277 = vld [vmem:[#allocation2 + $0x70] sm:$0xf]
      %v1278 = vld [vmem:[#allocation2 + $0x74] sm:$0xf]
      %v1279 = vld [vmem:[#allocation2 + $0x78] sm:$0xf]
      %v1280 = vld [vmem:[#allocation2 + $0x7c] sm:$0xf]
      %v1281 = vld [vmem:[%s4] sm:$0xf]
      %v1282 = vld [vmem:[%s4 + $0x4] sm:$0xf]
      %v1283 = vld [vmem:[%s4 + $0x8] sm:$0xf]
      %v1284 = vld [vmem:[%s4 + $0xc] sm:$0xf]
      %v1285 = vld [vmem:[%s4 + $0x10] sm:$0xf]
      %v1286 = vld [vmem:[%s4 + $0x14] sm:$0xf]
      %v1287 = vld [vmem:[%s4 + $0x18] sm:$0xf]
      %v1288 = vld [vmem:[%s4 + $0x1c] sm:$0xf]
      %v1289 = vld [vmem:[%s5] sm:$0x1]
      %v1291 = vlaneseq
      %v1292 = vshrl.u32 %v1291, 7
      %v1293 = vsub.s32 0, %v1292
      %v1294 = vrot.slane %v1289, %v1293
      %v1328 = vunpack.c.l.b16 %v1249
      %v1329 = vunpack.c.l.b16 %v1250
      %v1330 = vunpack.c.l.b16 %v1251
      %v1331 = vunpack.c.l.b16 %v1252
      %v1332 = vunpack.c.l.b16 %v1253
      %v1333 = vunpack.c.l.b16 %v1254
      %v1334 = vunpack.c.l.b16 %v1255
      %v1335 = vunpack.c.l.b16 %v1256
      %v1336 = vunpack.c.l.b16 %v1257
      %v1337 = vunpack.c.l.b16 %v1258
      %v1338 = vunpack.c.l.b16 %v1259
      %v1339 = vunpack.c.l.b16 %v1260
      %v1340 = vunpack.c.l.b16 %v1261
      %v1341 = vunpack.c.l.b16 %v1262
      %v1342 = vunpack.c.l.b16 %v1263
      %v1343 = vunpack.c.l.b16 %v1264
      %v1344 = vunpack.c.l.b16 %v1265
      %v1345 = vunpack.c.l.b16 %v1266
      %v1346 = vunpack.c.l.b16 %v1267
      %v1347 = vunpack.c.l.b16 %v1268
      %v1348 = vunpack.c.l.b16 %v1269
      %v1349 = vunpack.c.l.b16 %v1270
      %v1350 = vunpack.c.l.b16 %v1271
      %v1351 = vunpack.c.l.b16 %v1272
      %v1352 = vunpack.c.l.b16 %v1273
      %v1353 = vunpack.c.l.b16 %v1274
      %v1354 = vunpack.c.l.b16 %v1275
      %v1355 = vunpack.c.l.b16 %v1276
      %v1356 = vunpack.c.l.b16 %v1277
      %v1357 = vunpack.c.l.b16 %v1278
      %v1358 = vunpack.c.l.b16 %v1279
      %v1359 = vunpack.c.l.b16 %v1280
      %v1360 = vpack.c.b16 %v1329, %v1328
      %v1361 = vpack.c.b16 %v1331, %v1330
      %v1362 = vpack.c.b16 %v1333, %v1332
      %v1363 = vpack.c.b16 %v1335, %v1334
      %v1364 = vpack.c.b16 %v1337, %v1336
      %v1365 = vpack.c.b16 %v1339, %v1338
      %v1366 = vpack.c.b16 %v1341, %v1340
      %v1367 = vpack.c.b16 %v1343, %v1342
      %v1368 = vpack.c.b16 %v1345, %v1344
      %v1369 = vpack.c.b16 %v1347, %v1346
      %v1370 = vpack.c.b16 %v1349, %v1348
      %v1371 = vpack.c.b16 %v1351, %v1350
      %v1372 = vpack.c.b16 %v1353, %v1352
      %v1373 = vpack.c.b16 %v1355, %v1354
      %v1374 = vpack.c.b16 %v1357, %v1356
      %v1375 = vpack.c.b16 %v1359, %v1358
      %v1384 = vunpack.c.l.b16 %v1281
      %v1385 = vunpack.c.l.b16 %v1282
      %v1386 = vunpack.c.l.b16 %v1283
      %v1387 = vunpack.c.l.b16 %v1284
      %v1388 = vunpack.c.l.b16 %v1285
      %v1389 = vunpack.c.l.b16 %v1286
      %v1390 = vunpack.c.l.b16 %v1287
      %v1391 = vunpack.c.l.b16 %v1288
      %v1392 = vpack.c.b16 %v1385, %v1384
      %v1393 = vpack.c.b16 %v1387, %v1386
      %v1394 = vpack.c.b16 %v1389, %v1388
      %v1395 = vpack.c.b16 %v1391, %v1390
      %vm1400 = vcmask 523264
      %v1402 = vsel %vm1400, %v1360, 0
      %v1405 = vsel %vm1400, %v1361, 0
      %v1408 = vsel %vm1400, %v1362, 0
      %v1411 = vsel %vm1400, %v1363, 0
      %v1414 = vsel %vm1400, %v1364, 0
      %v1417 = vsel %vm1400, %v1365, 0
      %v1420 = vsel %vm1400, %v1366, 0
      %v1423 = vsel %vm1400, %v1367, 0
      %v1426 = vsel %vm1400, %v1368, 0
      %v1429 = vsel %vm1400, %v1369, 0
      %v1432 = vsel %vm1400, %v1370, 0
      %v1435 = vsel %vm1400, %v1371, 0
      %v1438 = vsel %vm1400, %v1372, 0
      %v1441 = vsel %vm1400, %v1373, 0
      %v1444 = vsel %vm1400, %v1374, 0
      %v1447 = vsel %vm1400, %v1375, 0
      %1449 = vmatprep.subr.bf16.mxu0 0
      %1450 = vmatpush1.bf16.msra.mxu0 0
      %1451 = vmatprep.subr.bf16.mxu0 0
      %1452 = vmatpush1.bf16.msra.mxu0 0
      %1453 = vmatprep.subr.bf16.mxu0 0
      %1454 = vmatpush1.bf16.msra.mxu0 0
      %1455 = vmatprep.subr.bf16.mxu0 0
      %1456 = vmatpush1.bf16.msra.mxu0 0
      %1457 = vmatprep.subr.bf16.mxu0 0
      %1458 = vmatpush1.bf16.msra.mxu0 %v1395
      %1459 = vmatprep.subr.bf16.mxu0 0
      %1460 = vmatpush1.bf16.msra.mxu0 %v1394
      %1461 = vmatprep.subr.bf16.mxu0 0
      %1462 = vmatpush1.bf16.msra.mxu0 %v1393
      %1463 = vmatprep.subr.bf16.mxu0 0
      %1464 = vmatpush1.bf16.msra.mxu0 %v1392
      %1465 = vmatprep.subr.bf16.mxu0 0
      %1466 = vmatpush2.bf16.msra.mxu0 0
      %1467 = vmatprep.subr.bf16.mxu0 0
      %1468 = vmatpush2.bf16.msra.mxu0 0
      %1469 = vmatprep.subr.bf16.mxu0 0
      %1470 = vmatpush2.bf16.msra.mxu0 0
      %1471 = vmatprep.subr.bf16.mxu0 0
      %1472 = vmatpush2.bf16.msra.mxu0 0
      %1473 = vmatprep.subr.bf16.mxu0 0
      %1474 = vmatpush2.bf16.msra.mxu0 0
      %1475 = vmatprep.subr.bf16.mxu0 0
      %1476 = vmatpush2.bf16.msra.mxu0 0
      %1477 = vmatprep.subr.bf16.mxu0 0
      %1478 = vmatpush2.bf16.msra.mxu0 0
      %1479 = vmatprep.subr.bf16.mxu0 0
      %1480 = vmatpush2.bf16.msra.mxu0 0
      %1481 = vmatprep.mubr.bf16.mxu0 0
      %1482 = vmatmul.mubr.bf16.gmra.mxu0 %v1402
      %v1483 = vpop.f32.mrf.mxu0
      %v1484 = vadd.f32 %v1294, %v1483
      %v1485 = vpop.f32.mrf.mxu0
      %v1486 = vpop.f32.mrf.mxu0
      %v1487 = vadd.f32 %v1294, %v1486
      %v1488 = vpop.f32.mrf.mxu0
      %1489 = vmatprep.mubr.bf16.mxu0 0
      %1490 = vmatmul.mubr.bf16.gmra.mxu0 %v1405
      %v1491 = vpop.f32.mrf.mxu0
      %v1492 = vadd.f32 %v1294, %v1491
      %v1493 = vpop.f32.mrf.mxu0
      %v1494 = vpop.f32.mrf.mxu0
      %v1495 = vadd.f32 %v1294, %v1494
      %v1496 = vpop.f32.mrf.mxu0
      %1497 = vmatprep.mubr.bf16.mxu0 0
      %1498 = vmatmul.mubr.bf16.gmra.mxu0 %v1408
      %v1499 = vpop.f32.mrf.mxu0
      %v1500 = vadd.f32 %v1294, %v1499
      %v1501 = vpop.f32.mrf.mxu0
      %v1502 = vpop.f32.mrf.mxu0
      %v1503 = vadd.f32 %v1294, %v1502
      %v1504 = vpop.f32.mrf.mxu0
      %1505 = vmatprep.mubr.bf16.mxu0 0
      %1506 = vmatmul.mubr.bf16.gmra.mxu0 %v1411
      %v1507 = vpop.f32.mrf.mxu0
      %v1508 = vadd.f32 %v1294, %v1507
      %v1509 = vpop.f32.mrf.mxu0
      %v1510 = vpop.f32.mrf.mxu0
      %v1511 = vadd.f32 %v1294, %v1510
      %v1512 = vpop.f32.mrf.mxu0
      %1513 = vmatprep.mubr.bf16.mxu0 0
      %1514 = vmatmul.mubr.bf16.gmra.mxu0 %v1414
      %v1515 = vpop.f32.mrf.mxu0
      %v1516 = vadd.f32 %v1294, %v1515
      %v1517 = vpop.f32.mrf.mxu0
      %v1518 = vpop.f32.mrf.mxu0
      %v1519 = vadd.f32 %v1294, %v1518
      %v1520 = vpop.f32.mrf.mxu0
      %1521 = vmatprep.mubr.bf16.mxu0 0
      %1522 = vmatmul.mubr.bf16.gmra.mxu0 %v1417
      %v1523 = vpop.f32.mrf.mxu0
      %v1524 = vadd.f32 %v1294, %v1523
      %v1525 = vpop.f32.mrf.mxu0
      %v1526 = vpop.f32.mrf.mxu0
      %v1527 = vadd.f32 %v1294, %v1526
      %v1528 = vpop.f32.mrf.mxu0
      %1529 = vmatprep.mubr.bf16.mxu0 0
      %1530 = vmatmul.mubr.bf16.gmra.mxu0 %v1420
      %v1531 = vpop.f32.mrf.mxu0
      %v1532 = vadd.f32 %v1294, %v1531
      %v1533 = vpop.f32.mrf.mxu0
      %v1534 = vpop.f32.mrf.mxu0
      %v1535 = vadd.f32 %v1294, %v1534
      %v1536 = vpop.f32.mrf.mxu0
      %1537 = vmatprep.mubr.bf16.mxu0 0
      %1538 = vmatmul.mubr.bf16.gmra.mxu0 %v1423
      %v1539 = vpop.f32.mrf.mxu0
      %v1540 = vadd.f32 %v1294, %v1539
      %v1541 = vpop.f32.mrf.mxu0
      %v1542 = vpop.f32.mrf.mxu0
      %v1543 = vadd.f32 %v1294, %v1542
      %v1544 = vpop.f32.mrf.mxu0
      %1545 = vmatprep.mubr.bf16.mxu0 0
      %1546 = vmatmul.mubr.bf16.gmra.mxu0 %v1426
      %v1547 = vpop.f32.mrf.mxu0
      %v1548 = vadd.f32 %v1294, %v1547
      %v1549 = vpop.f32.mrf.mxu0
      %v1550 = vpop.f32.mrf.mxu0
      %v1551 = vadd.f32 %v1294, %v1550
      %v1552 = vpop.f32.mrf.mxu0
      %1553 = vmatprep.mubr.bf16.mxu0 0
      %1554 = vmatmul.mubr.bf16.gmra.mxu0 %v1429
      %v1555 = vpop.f32.mrf.mxu0
      %v1556 = vadd.f32 %v1294, %v1555
      %v1557 = vpop.f32.mrf.mxu0
      %v1558 = vpop.f32.mrf.mxu0
      %v1559 = vadd.f32 %v1294, %v1558
      %v1560 = vpop.f32.mrf.mxu0
      %1561 = vmatprep.mubr.bf16.mxu0 0
      %1562 = vmatmul.mubr.bf16.gmra.mxu0 %v1432
      %v1563 = vpop.f32.mrf.mxu0
      %v1564 = vadd.f32 %v1294, %v1563
      %v1565 = vpop.f32.mrf.mxu0
      %v1566 = vpop.f32.mrf.mxu0
      %v1567 = vadd.f32 %v1294, %v1566
      %v1568 = vpop.f32.mrf.mxu0
      %1569 = vmatprep.mubr.bf16.mxu0 0
      %1570 = vmatmul.mubr.bf16.gmra.mxu0 %v1435
      %v1571 = vpop.f32.mrf.mxu0
      %v1572 = vadd.f32 %v1294, %v1571
      %v1573 = vpop.f32.mrf.mxu0
      %v1574 = vpop.f32.mrf.mxu0
      %v1575 = vadd.f32 %v1294, %v1574
      %v1576 = vpop.f32.mrf.mxu0
      %1577 = vmatprep.mubr.bf16.mxu0 0
      %1578 = vmatmul.mubr.bf16.gmra.mxu0 %v1438
      %v1579 = vpop.f32.mrf.mxu0
      %v1580 = vadd.f32 %v1294, %v1579
      %v1581 = vpop.f32.mrf.mxu0
      %v1582 = vpop.f32.mrf.mxu0
      %v1583 = vadd.f32 %v1294, %v1582
      %v1584 = vpop.f32.mrf.mxu0
      %1585 = vmatprep.mubr.bf16.mxu0 0
      %1586 = vmatmul.mubr.bf16.gmra.mxu0 %v1441
      %v1587 = vpop.f32.mrf.mxu0
      %v1588 = vadd.f32 %v1294, %v1587
      %v1589 = vpop.f32.mrf.mxu0
      %v1590 = vpop.f32.mrf.mxu0
      %v1591 = vadd.f32 %v1294, %v1590
      %v1592 = vpop.f32.mrf.mxu0
      %1593 = vmatprep.mubr.bf16.mxu0 0
      %1594 = vmatmul.mubr.bf16.gmra.mxu0 %v1444
      %v1595 = vpop.f32.mrf.mxu0
      %v1596 = vadd.f32 %v1294, %v1595
      %v1597 = vpop.f32.mrf.mxu0
      %v1598 = vpop.f32.mrf.mxu0
      %v1599 = vadd.f32 %v1294, %v1598
      %v1600 = vpop.f32.mrf.mxu0
      %1601 = vmatprep.mubr.bf16.mxu0 0
      %1602 = vmatmul.mubr.bf16.gmra.mxu0 %v1447
      %v1603 = vpop.f32.mrf.mxu0
      %v1604 = vadd.f32 %v1294, %v1603
      %v1605 = vpop.f32.mrf.mxu0
      %v1606 = vpop.f32.mrf.mxu0
      %v1607 = vadd.f32 %v1294, %v1606
      %v1608 = vpop.f32.mrf.mxu0
      %1609 = vdwg.mxu0
      %v1610 = vmax.f32 %v1484, 0.0
      %v1611 = vmax.f32 %v1487, 0.0
      %v1612 = vmax.f32 %v1492, 0.0
      %v1613 = vmax.f32 %v1495, 0.0
      %v1614 = vmax.f32 %v1500, 0.0
      %v1615 = vmax.f32 %v1503, 0.0
      %v1616 = vmax.f32 %v1508, 0.0
      %v1617 = vmax.f32 %v1511, 0.0
      %v1618 = vmax.f32 %v1516, 0.0
      %v1619 = vmax.f32 %v1519, 0.0
      %v1620 = vmax.f32 %v1524, 0.0
      %v1621 = vmax.f32 %v1527, 0.0
      %v1622 = vmax.f32 %v1532, 0.0
      %v1623 = vmax.f32 %v1535, 0.0
      %v1624 = vmax.f32 %v1540, 0.0
      %v1625 = vmax.f32 %v1543, 0.0
      %v1626 = vmax.f32 %v1548, 0.0
      %v1627 = vmax.f32 %v1551, 0.0
      %v1628 = vmax.f32 %v1556, 0.0
      %v1629 = vmax.f32 %v1559, 0.0
      %v1630 = vmax.f32 %v1564, 0.0
      %v1631 = vmax.f32 %v1567, 0.0
      %v1632 = vmax.f32 %v1572, 0.0
      %v1633 = vmax.f32 %v1575, 0.0
      %v1634 = vmax.f32 %v1580, 0.0
      %v1635 = vmax.f32 %v1583, 0.0
      %v1636 = vmax.f32 %v1588, 0.0
      %v1637 = vmax.f32 %v1591, 0.0
      %v1638 = vmax.f32 %v1596, 0.0
      %v1639 = vmax.f32 %v1599, 0.0
      %v1640 = vmax.f32 %v1604, 0.0
      %v1641 = vmax.f32 %v1607, 0.0
      %v1642 = vpack.c.bf16 %v1611, %v1610
      %v1643 = vpack.c.bf16 %v1613, %v1612
      %v1644 = vpack.c.bf16 %v1615, %v1614
      %v1645 = vpack.c.bf16 %v1617, %v1616
      %v1646 = vpack.c.bf16 %v1619, %v1618
      %v1647 = vpack.c.bf16 %v1621, %v1620
      %v1648 = vpack.c.bf16 %v1623, %v1622
      %v1649 = vpack.c.bf16 %v1625, %v1624
      %v1650 = vpack.c.bf16 %v1627, %v1626
      %v1651 = vpack.c.bf16 %v1629, %v1628
      %v1652 = vpack.c.bf16 %v1631, %v1630
      %v1653 = vpack.c.bf16 %v1633, %v1632
      %v1654 = vpack.c.bf16 %v1635, %v1634
      %v1655 = vpack.c.bf16 %v1637, %v1636
      %v1656 = vpack.c.bf16 %v1639, %v1638
      %v1657 = vpack.c.bf16 %v1641, %v1640
      %v1658 = vld [vmem:[%s6] sm:$0xff]
      %v1659 = vld [vmem:[%s6 + $0x8] sm:$0xff]
      %v1660 = vld [vmem:[%s6 + $0x10] sm:$0xff]
      %v1661 = vld [vmem:[%s6 + $0x18] sm:$0xff]
      %v1662 = vld [vmem:[%s6 + $0x20] sm:$0xff]
      %v1663 = vld [vmem:[%s6 + $0x28] sm:$0xff]
      %v1664 = vld [vmem:[%s6 + $0x30] sm:$0xff]
      %v1665 = vld [vmem:[%s6 + $0x38] sm:$0xff]
      %v1666 = vld [vmem:[%s6 + $0x40] sm:$0xff]
      %v1667 = vld [vmem:[%s6 + $0x48] sm:$0xff]
      %v1668 = vld [vmem:[%s6 + $0x50] sm:$0xff]
      %v1669 = vld [vmem:[%s6 + $0x58] sm:$0xff]
      %v1670 = vld [vmem:[%s6 + $0x60] sm:$0xff]
      %v1671 = vld [vmem:[%s6 + $0x68] sm:$0xff]
      %v1672 = vld [vmem:[%s6 + $0x70] sm:$0xff]
      %v1673 = vld [vmem:[%s6 + $0x78] sm:$0xff]
      %v1674 = vld [vmem:[%s7] sm:$0x3]
      %v1676 = vlaneseq
      %v1677 = vshrl.u32 %v1676, 7
      %v1678 = vsub.s32 0, %v1677
      %v1679 = vrot.slane %v1674, %v1678
      %v1680 = vlaneseq
      %v1681 = vshrl.u32 %v1680, 7
      %v1682 = vsub.s32 1, %v1681
      %v1683 = vrot.slane %v1674, %v1682
      %v1702 = vunpack.c.l.b16 %v1658
      %v1703 = vunpack.c.h.b16 %v1658
      %v1704 = vunpack.c.l.b16 %v1659
      %v1705 = vunpack.c.h.b16 %v1659
      %v1706 = vunpack.c.l.b16 %v1660
      %v1707 = vunpack.c.h.b16 %v1660
      %v1708 = vunpack.c.l.b16 %v1661
      %v1709 = vunpack.c.h.b16 %v1661
      %v1710 = vunpack.c.l.b16 %v1662
      %v1711 = vunpack.c.h.b16 %v1662
      %v1712 = vunpack.c.l.b16 %v1663
      %v1713 = vunpack.c.h.b16 %v1663
      %v1714 = vunpack.c.l.b16 %v1664
      %v1715 = vunpack.c.h.b16 %v1664
      %v1716 = vunpack.c.l.b16 %v1665
      %v1717 = vunpack.c.h.b16 %v1665
      %v1718 = vunpack.c.l.b16 %v1666
      %v1719 = vunpack.c.h.b16 %v1666
      %v1720 = vunpack.c.l.b16 %v1667
      %v1721 = vunpack.c.h.b16 %v1667
      %v1722 = vunpack.c.l.b16 %v1668
      %v1723 = vunpack.c.h.b16 %v1668
      %v1724 = vunpack.c.l.b16 %v1669
      %v1725 = vunpack.c.h.b16 %v1669
      %v1726 = vunpack.c.l.b16 %v1670
      %v1727 = vunpack.c.h.b16 %v1670
      %v1728 = vunpack.c.l.b16 %v1671
      %v1729 = vunpack.c.h.b16 %v1671
      %v1730 = vunpack.c.l.b16 %v1672
      %v1731 = vunpack.c.h.b16 %v1672
      %v1732 = vunpack.c.l.b16 %v1673
      %v1733 = vunpack.c.h.b16 %v1673
      %v1734 = vpack.c.b16 %v1704, %v1702
      %v1735 = vpack.c.b16 %v1705, %v1703
      %v1736 = vpack.c.b16 %v1708, %v1706
      %v1737 = vpack.c.b16 %v1709, %v1707
      %v1738 = vpack.c.b16 %v1712, %v1710
      %v1739 = vpack.c.b16 %v1713, %v1711
      %v1740 = vpack.c.b16 %v1716, %v1714
      %v1741 = vpack.c.b16 %v1717, %v1715
      %v1742 = vpack.c.b16 %v1720, %v1718
      %v1743 = vpack.c.b16 %v1721, %v1719
      %v1744 = vpack.c.b16 %v1724, %v1722
      %v1745 = vpack.c.b16 %v1725, %v1723
      %v1746 = vpack.c.b16 %v1728, %v1726
      %v1747 = vpack.c.b16 %v1729, %v1727
      %v1748 = vpack.c.b16 %v1732, %v1730
      %v1749 = vpack.c.b16 %v1733, %v1731
      %1766 = vmatprep.subr.bf16.mxu0 %v1749
      %1767 = vmatpush1.bf16.msra.mxu0 %v1748
      %1768 = vmatprep.subr.bf16.mxu0 %v1747
      %1769 = vmatpush1.bf16.msra.mxu0 %v1746
      %1770 = vmatprep.subr.bf16.mxu0 %v1745
      %1771 = vmatpush1.bf16.msra.mxu0 %v1744
      %1772 = vmatprep.subr.bf16.mxu0 %v1743
      %1773 = vmatpush1.bf16.msra.mxu0 %v1742
      %1774 = vmatprep.subr.bf16.mxu0 %v1741
      %1775 = vmatpush1.bf16.msra.mxu0 %v1740
      %1776 = vmatprep.subr.bf16.mxu0 %v1739
      %1777 = vmatpush1.bf16.msra.mxu0 %v1738
      %1778 = vmatprep.subr.bf16.mxu0 %v1737
      %1779 = vmatpush1.bf16.msra.mxu0 %v1736
      %1780 = vmatprep.subr.bf16.mxu0 %v1735
      %1781 = vmatpush1.bf16.msra.mxu0 %v1734
      %1782 = vmatprep.subr.bf16.mxu0 0
      %1783 = vmatpush2.bf16.msra.mxu0 0
      %1784 = vmatprep.subr.bf16.mxu0 0
      %1785 = vmatpush2.bf16.msra.mxu0 0
      %1786 = vmatprep.subr.bf16.mxu0 0
      %1787 = vmatpush2.bf16.msra.mxu0 0
      %1788 = vmatprep.subr.bf16.mxu0 0
      %1789 = vmatpush2.bf16.msra.mxu0 0
      %1790 = vmatprep.subr.bf16.mxu0 0
      %1791 = vmatpush2.bf16.msra.mxu0 0
      %1792 = vmatprep.subr.bf16.mxu0 0
      %1793 = vmatpush2.bf16.msra.mxu0 0
      %1794 = vmatprep.subr.bf16.mxu0 0
      %1795 = vmatpush2.bf16.msra.mxu0 0
      %1796 = vmatprep.subr.bf16.mxu0 0
      %1797 = vmatpush2.bf16.msra.mxu0 0
      %1798 = vmatprep.mubr.bf16.mxu0 0
      %1799 = vmatmul.mubr.bf16.gmra.mxu0 %v1642
      %v1800 = vpop.f32.mrf.mxu0
      %v1801 = vadd.f32 %v1679, %v1800
      %v1802 = vpop.f32.mrf.mxu0
      %v1803 = vadd.f32 %v1683, %v1802
      %v1804 = vpop.f32.mrf.mxu0
      %v1805 = vadd.f32 %v1679, %v1804
      %v1806 = vpop.f32.mrf.mxu0
      %v1807 = vadd.f32 %v1683, %v1806
      %1808 = vmatprep.mubr.bf16.mxu0 0
      %1809 = vmatmul.mubr.bf16.gmra.mxu0 %v1643
      %v1810 = vpop.f32.mrf.mxu0
      %v1811 = vadd.f32 %v1679, %v1810
      %v1812 = vpop.f32.mrf.mxu0
      %v1813 = vadd.f32 %v1683, %v1812
      %v1814 = vpop.f32.mrf.mxu0
      %v1815 = vadd.f32 %v1679, %v1814
      %v1816 = vpop.f32.mrf.mxu0
      %v1817 = vadd.f32 %v1683, %v1816
      %1818 = vmatprep.mubr.bf16.mxu0 0
      %1819 = vmatmul.mubr.bf16.gmra.mxu0 %v1644
      %v1820 = vpop.f32.mrf.mxu0
      %v1821 = vadd.f32 %v1679, %v1820
      %v1822 = vpop.f32.mrf.mxu0
      %v1823 = vadd.f32 %v1683, %v1822
      %v1824 = vpop.f32.mrf.mxu0
      %v1825 = vadd.f32 %v1679, %v1824
      %v1826 = vpop.f32.mrf.mxu0
      %v1827 = vadd.f32 %v1683, %v1826
      %1828 = vmatprep.mubr.bf16.mxu0 0
      %1829 = vmatmul.mubr.bf16.gmra.mxu0 %v1645
      %v1830 = vpop.f32.mrf.mxu0
      %v1831 = vadd.f32 %v1679, %v1830
      %v1832 = vpop.f32.mrf.mxu0
      %v1833 = vadd.f32 %v1683, %v1832
      %v1834 = vpop.f32.mrf.mxu0
      %v1835 = vadd.f32 %v1679, %v1834
      %v1836 = vpop.f32.mrf.mxu0
      %v1837 = vadd.f32 %v1683, %v1836
      %1838 = vmatprep.mubr.bf16.mxu0 0
      %1839 = vmatmul.mubr.bf16.gmra.mxu0 %v1646
      %v1840 = vpop.f32.mrf.mxu0
      %v1841 = vadd.f32 %v1679, %v1840
      %v1842 = vpop.f32.mrf.mxu0
      %v1843 = vadd.f32 %v1683, %v1842
      %v1844 = vpop.f32.mrf.mxu0
      %v1845 = vadd.f32 %v1679, %v1844
      %v1846 = vpop.f32.mrf.mxu0
      %v1847 = vadd.f32 %v1683, %v1846
      %1848 = vmatprep.mubr.bf16.mxu0 0
      %1849 = vmatmul.mubr.bf16.gmra.mxu0 %v1647
      %v1850 = vpop.f32.mrf.mxu0
      %v1851 = vadd.f32 %v1679, %v1850
      %v1852 = vpop.f32.mrf.mxu0
      %v1853 = vadd.f32 %v1683, %v1852
      %v1854 = vpop.f32.mrf.mxu0
      %v1855 = vadd.f32 %v1679, %v1854
      %v1856 = vpop.f32.mrf.mxu0
      %v1857 = vadd.f32 %v1683, %v1856
      %1858 = vmatprep.mubr.bf16.mxu0 0
      %1859 = vmatmul.mubr.bf16.gmra.mxu0 %v1648
      %v1860 = vpop.f32.mrf.mxu0
      %v1861 = vadd.f32 %v1679, %v1860
      %v1862 = vpop.f32.mrf.mxu0
      %v1863 = vadd.f32 %v1683, %v1862
      %v1864 = vpop.f32.mrf.mxu0
      %v1865 = vadd.f32 %v1679, %v1864
      %v1866 = vpop.f32.mrf.mxu0
      %v1867 = vadd.f32 %v1683, %v1866
      %1868 = vmatprep.mubr.bf16.mxu0 0
      %1869 = vmatmul.mubr.bf16.gmra.mxu0 %v1649
      %v1870 = vpop.f32.mrf.mxu0
      %v1871 = vadd.f32 %v1679, %v1870
      %v1872 = vpop.f32.mrf.mxu0
      %v1873 = vadd.f32 %v1683, %v1872
      %v1874 = vpop.f32.mrf.mxu0
      %v1875 = vadd.f32 %v1679, %v1874
      %v1876 = vpop.f32.mrf.mxu0
      %v1877 = vadd.f32 %v1683, %v1876
      %1878 = vmatprep.mubr.bf16.mxu0 0
      %1879 = vmatmul.mubr.bf16.gmra.mxu0 %v1650
      %v1880 = vpop.f32.mrf.mxu0
      %v1881 = vadd.f32 %v1679, %v1880
      %v1882 = vpop.f32.mrf.mxu0
      %v1883 = vadd.f32 %v1683, %v1882
      %v1884 = vpop.f32.mrf.mxu0
      %v1885 = vadd.f32 %v1679, %v1884
      %v1886 = vpop.f32.mrf.mxu0
      %v1887 = vadd.f32 %v1683, %v1886
      %1888 = vmatprep.mubr.bf16.mxu0 0
      %1889 = vmatmul.mubr.bf16.gmra.mxu0 %v1651
      %v1890 = vpop.f32.mrf.mxu0
      %v1891 = vadd.f32 %v1679, %v1890
      %v1892 = vpop.f32.mrf.mxu0
      %v1893 = vadd.f32 %v1683, %v1892
      %v1894 = vpop.f32.mrf.mxu0
      %v1895 = vadd.f32 %v1679, %v1894
      %v1896 = vpop.f32.mrf.mxu0
      %v1897 = vadd.f32 %v1683, %v1896
      %1898 = vmatprep.mubr.bf16.mxu0 0
      %1899 = vmatmul.mubr.bf16.gmra.mxu0 %v1652
      %v1900 = vpop.f32.mrf.mxu0
      %v1901 = vadd.f32 %v1679, %v1900
      %v1902 = vpop.f32.mrf.mxu0
      %v1903 = vadd.f32 %v1683, %v1902
      %v1904 = vpop.f32.mrf.mxu0
      %v1905 = vadd.f32 %v1679, %v1904
      %v1906 = vpop.f32.mrf.mxu0
      %v1907 = vadd.f32 %v1683, %v1906
      %1908 = vmatprep.mubr.bf16.mxu0 0
      %1909 = vmatmul.mubr.bf16.gmra.mxu0 %v1653
      %v1910 = vpop.f32.mrf.mxu0
      %v1911 = vadd.f32 %v1679, %v1910
      %v1912 = vpop.f32.mrf.mxu0
      %v1913 = vadd.f32 %v1683, %v1912
      %v1914 = vpop.f32.mrf.mxu0
      %v1915 = vadd.f32 %v1679, %v1914
      %v1916 = vpop.f32.mrf.mxu0
      %v1917 = vadd.f32 %v1683, %v1916
      %1918 = vmatprep.mubr.bf16.mxu0 0
      %1919 = vmatmul.mubr.bf16.gmra.mxu0 %v1654
      %v1920 = vpop.f32.mrf.mxu0
      %v1921 = vadd.f32 %v1679, %v1920
      %v1922 = vpop.f32.mrf.mxu0
      %v1923 = vadd.f32 %v1683, %v1922
      %v1924 = vpop.f32.mrf.mxu0
      %v1925 = vadd.f32 %v1679, %v1924
      %v1926 = vpop.f32.mrf.mxu0
      %v1927 = vadd.f32 %v1683, %v1926
      %1928 = vmatprep.mubr.bf16.mxu0 0
      %1929 = vmatmul.mubr.bf16.gmra.mxu0 %v1655
      %v1930 = vpop.f32.mrf.mxu0
      %v1931 = vadd.f32 %v1679, %v1930
      %v1932 = vpop.f32.mrf.mxu0
      %v1933 = vadd.f32 %v1683, %v1932
      %v1934 = vpop.f32.mrf.mxu0
      %v1935 = vadd.f32 %v1679, %v1934
      %v1936 = vpop.f32.mrf.mxu0
      %v1937 = vadd.f32 %v1683, %v1936
      %1938 = vmatprep.mubr.bf16.mxu0 0
      %1939 = vmatmul.mubr.bf16.gmra.mxu0 %v1656
      %v1940 = vpop.f32.mrf.mxu0
      %v1941 = vadd.f32 %v1679, %v1940
      %v1942 = vpop.f32.mrf.mxu0
      %v1943 = vadd.f32 %v1683, %v1942
      %v1944 = vpop.f32.mrf.mxu0
      %v1945 = vadd.f32 %v1679, %v1944
      %v1946 = vpop.f32.mrf.mxu0
      %v1947 = vadd.f32 %v1683, %v1946
      %1948 = vmatprep.mubr.bf16.mxu0 0
      %1949 = vmatmul.mubr.bf16.gmra.mxu0 %v1657
      %v1950 = vpop.f32.mrf.mxu0
      %v1951 = vadd.f32 %v1679, %v1950
      %v1952 = vpop.f32.mrf.mxu0
      %v1953 = vadd.f32 %v1683, %v1952
      %v1954 = vpop.f32.mrf.mxu0
      %v1955 = vadd.f32 %v1679, %v1954
      %v1956 = vpop.f32.mrf.mxu0
      %v1957 = vadd.f32 %v1683, %v1956
      %1958 = vdwg.mxu0
      %v1959 = vmax.f32 %v1801, 0.0
      %v1960 = vmax.f32 %v1803, 0.0
      %v1961 = vmax.f32 %v1805, 0.0
      %v1962 = vmax.f32 %v1807, 0.0
      %v1963 = vmax.f32 %v1811, 0.0
      %v1964 = vmax.f32 %v1813, 0.0
      %v1965 = vmax.f32 %v1815, 0.0
      %v1966 = vmax.f32 %v1817, 0.0
      %v1967 = vmax.f32 %v1821, 0.0
      %v1968 = vmax.f32 %v1823, 0.0
      %v1969 = vmax.f32 %v1825, 0.0
      %v1970 = vmax.f32 %v1827, 0.0
      %v1971 = vmax.f32 %v1831, 0.0
      %v1972 = vmax.f32 %v1833, 0.0
      %v1973 = vmax.f32 %v1835, 0.0
      %v1974 = vmax.f32 %v1837, 0.0
      %v1975 = vmax.f32 %v1841, 0.0
      %v1976 = vmax.f32 %v1843, 0.0
      %v1977 = vmax.f32 %v1845, 0.0
      %v1978 = vmax.f32 %v1847, 0.0
      %v1979 = vmax.f32 %v1851, 0.0
      %v1980 = vmax.f32 %v1853, 0.0
      %v1981 = vmax.f32 %v1855, 0.0
      %v1982 = vmax.f32 %v1857, 0.0
      %v1983 = vmax.f32 %v1861, 0.0
      %v1984 = vmax.f32 %v1863, 0.0
      %v1985 = vmax.f32 %v1865, 0.0
      %v1986 = vmax.f32 %v1867, 0.0
      %v1987 = vmax.f32 %v1871, 0.0
      %v1988 = vmax.f32 %v1873, 0.0
      %v1989 = vmax.f32 %v1875, 0.0
      %v1990 = vmax.f32 %v1877, 0.0
      %v1991 = vmax.f32 %v1881, 0.0
      %v1992 = vmax.f32 %v1883, 0.0
      %v1993 = vmax.f32 %v1885, 0.0
      %v1994 = vmax.f32 %v1887, 0.0
      %v1995 = vmax.f32 %v1891, 0.0
      %v1996 = vmax.f32 %v1893, 0.0
      %v1997 = vmax.f32 %v1895, 0.0
      %v1998 = vmax.f32 %v1897, 0.0
      %v1999 = vmax.f32 %v1901, 0.0
      %v2000 = vmax.f32 %v1903, 0.0
      %v2001 = vmax.f32 %v1905, 0.0
      %v2002 = vmax.f32 %v1907, 0.0
      %v2003 = vmax.f32 %v1911, 0.0
      %v2004 = vmax.f32 %v1913, 0.0
      %v2005 = vmax.f32 %v1915, 0.0
      %v2006 = vmax.f32 %v1917, 0.0
      %v2007 = vmax.f32 %v1921, 0.0
      %v2008 = vmax.f32 %v1923, 0.0
      %v2009 = vmax.f32 %v1925, 0.0
      %v2010 = vmax.f32 %v1927, 0.0
      %v2011 = vmax.f32 %v1931, 0.0
      %v2012 = vmax.f32 %v1933, 0.0
      %v2013 = vmax.f32 %v1935, 0.0
      %v2014 = vmax.f32 %v1937, 0.0
      %v2015 = vmax.f32 %v1941, 0.0
      %v2016 = vmax.f32 %v1943, 0.0
      %v2017 = vmax.f32 %v1945, 0.0
      %v2018 = vmax.f32 %v1947, 0.0
      %v2019 = vmax.f32 %v1951, 0.0
      %v2020 = vmax.f32 %v1953, 0.0
      %v2021 = vmax.f32 %v1955, 0.0
      %v2022 = vmax.f32 %v1957, 0.0
      %v2023 = vmax.f32 %v1959, %v1963
      %v2024 = vmax.f32 %v1961, %v1965
      %v2025 = vmax.f32 %v2023, %v1967
      %v2026 = vmax.f32 %v2024, %v1969
      %v2027 = vmax.f32 %v2025, %v1971
      %v2028 = vmax.f32 %v2026, %v1973
      %v2029 = vmax.f32 %v2027, %v1975
      %v2030 = vmax.f32 %v2028, %v1977
      %v2031 = vmax.f32 %v2029, %v1979
      %v2032 = vmax.f32 %v2030, %v1981
      %v2033 = vmax.f32 %v2031, %v1983
      %v2034 = vmax.f32 %v2032, %v1985
      %v2035 = vmax.f32 %v2033, %v1987
      %v2036 = vmax.f32 %v2034, %v1989
      %v2037 = vmax.f32 %v2035, %v2036
      %v2038 = vrot.slane %v2037, 4
      %v2039 = vmax.f32 %v2037, %v2038
      %v2040 = vrot.slane %v2039, 2
      %v2041 = vmax.f32 %v2039, %v2040
      %v2042 = vrot.slane %v2041, 1
      %v2043 = vmax.f32 %v2041, %v2042
      %v2044 = vmax.f32 %v1960, %v1964
      %v2045 = vmax.f32 %v1962, %v1966
      %v2046 = vmax.f32 %v2044, %v1968
      %v2047 = vmax.f32 %v2045, %v1970
      %v2048 = vmax.f32 %v2046, %v1972
      %v2049 = vmax.f32 %v2047, %v1974
      %v2050 = vmax.f32 %v2048, %v1976
      %v2051 = vmax.f32 %v2049, %v1978
      %v2052 = vmax.f32 %v2050, %v1980
      %v2053 = vmax.f32 %v2051, %v1982
      %v2054 = vmax.f32 %v2052, %v1984
      %v2055 = vmax.f32 %v2053, %v1986
      %v2056 = vmax.f32 %v2054, %v1988
      %v2057 = vmax.f32 %v2055, %v1990
      %v2058 = vmax.f32 %v2056, %v2057
      %v2059 = vrot.slane %v2058, 4
      %v2060 = vmax.f32 %v2058, %v2059
      %v2061 = vrot.slane %v2060, 2
      %v2062 = vmax.f32 %v2060, %v2061
      %v2063 = vrot.slane %v2062, 1
      %v2064 = vmax.f32 %v2062, %v2063
      %v2065 = vmax.f32 %v1991, %v1995
      %v2066 = vmax.f32 %v1993, %v1997
      %v2067 = vmax.f32 %v2065, %v1999
      %v2068 = vmax.f32 %v2066, %v2001
      %v2069 = vmax.f32 %v2067, %v2003
      %v2070 = vmax.f32 %v2068, %v2005
      %v2071 = vmax.f32 %v2069, %v2007
      %v2072 = vmax.f32 %v2070, %v2009
      %v2073 = vmax.f32 %v2071, %v2011
      %v2074 = vmax.f32 %v2072, %v2013
      %v2075 = vmax.f32 %v2073, %v2015
      %v2076 = vmax.f32 %v2074, %v2017
      %v2077 = vmax.f32 %v2075, %v2019
      %v2078 = vmax.f32 %v2076, %v2021
      %v2079 = vmax.f32 %v2077, %v2078
      %v2080 = vrot.slane %v2079, 4
      %v2081 = vmax.f32 %v2079, %v2080
      %v2082 = vrot.slane %v2081, 2
      %v2083 = vmax.f32 %v2081, %v2082
      %v2084 = vrot.slane %v2083, 1
      %v2085 = vmax.f32 %v2083, %v2084
      %v2086 = vmax.f32 %v1992, %v1996
      %v2087 = vmax.f32 %v1994, %v1998
      %v2088 = vmax.f32 %v2086, %v2000
      %v2089 = vmax.f32 %v2087, %v2002
      %v2090 = vmax.f32 %v2088, %v2004
      %v2091 = vmax.f32 %v2089, %v2006
      %v2092 = vmax.f32 %v2090, %v2008
      %v2093 = vmax.f32 %v2091, %v2010
      %v2094 = vmax.f32 %v2092, %v2012
      %v2095 = vmax.f32 %v2093, %v2014
      %v2096 = vmax.f32 %v2094, %v2016
      %v2097 = vmax.f32 %v2095, %v2018
      %v2098 = vmax.f32 %v2096, %v2020
      %v2099 = vmax.f32 %v2097, %v2022
      %v2100 = vmax.f32 %v2098, %v2099
      %v2101 = vrot.slane %v2100, 4
      %v2102 = vmax.f32 %v2100, %v2101
      %v2103 = vrot.slane %v2102, 2
      %v2104 = vmax.f32 %v2102, %v2103
      %v2105 = vrot.slane %v2104, 1
      %v2106 = vmax.f32 %v2104, %v2105
      %v2107 = vld [vmem:[%s372] sm:$0x3]
      %v2110 = vcombine.low %v2043, %v2064
      %v2112 = vunpack.c.l.s4 1966171168
      %v2113 = vunpack.c.0.s8 %v2112
      %v2114 = vlaneseq
      %v2115 = vshrl.u32 %v2114, 7
      %v2116 = vsub.s32 %v2113, %v2115
      %v2117 = vrot.slane %v2110, %v2116
      %v2119 = vunpack.c.l.s4 1966171168
      %v2120 = vunpack.c.0.s8 %v2119
      %v2121 = vlaneseq
      %v2122 = vshrl.u32 %v2121, 7
      %v2123 = vsub.s32 %v2120, %v2122
      %v2124 = vrot.slane %v2117, %v2123
      %v2126 = vmax.f32 %v2107, %v2124
      %v2127 = vlaneseq
      %vm2128 = vcmp.ge.s32.totalorder %v2127, 0
      %vm2129 = vcmp.lt.s32.totalorder %v2127, 256
      %vm2130 = vmand %vm2128, %vm2129
      %2131 = vst.msk [vmem:[%s372] sm:$0x3] %vm2130, %v2126
      %v2132 = vld [vmem:[%s372 + $0x2] sm:$0x3]
      %v2135 = vcombine.low %v2085, %v2106
      %v2137 = vunpack.c.l.s4 1966171168
      %v2138 = vunpack.c.0.s8 %v2137
      %v2139 = vlaneseq
      %v2140 = vshrl.u32 %v2139, 7
      %v2141 = vsub.s32 %v2138, %v2140
      %v2142 = vrot.slane %v2135, %v2141
      %v2144 = vunpack.c.l.s4 1966171168
      %v2145 = vunpack.c.0.s8 %v2144
      %v2146 = vlaneseq
      %v2147 = vshrl.u32 %v2146, 7
      %v2148 = vsub.s32 %v2145, %v2147
      %v2149 = vrot.slane %v2142, %v2148
      %v2151 = vmax.f32 %v2132, %v2149
      %2152 = vst.msk [vmem:[%s372 + $0x2] sm:$0x3] %vm2130, %v2151
      %p2153 = scmp.lt.s32.totalorder %s24, 1
      %s2154 = scalar_select %p2153, %s24, 1
      %p2155 = scmp.lt.s32.totalorder %s25, 0
      %s2156 = scalar_select %p2155, %s25, 0
      %s2157 = smul.addr %s2156, 4
      %s2158 = smul.addr %s2154, 4
      %s2159 = sadd.s32 %s2157, %s2158
      %s2160 = scalar_lea.vmem %s8, %s2159
      // Predicated region
      $region57: #{pointnetv3_treg_forward.1} parent=51 // pred_check
        %p2161 = pneg %p240
      $region58: #{pointnetv3_treg_forward.1} parent=51 // pred_check_branch
        %2163 = sbr.rel (%p2161) target = $region60
      $region59: #{pointnetv3_treg_forward.1} parent=51 // pred_region
        _
      $region60: #{pointnetv3_treg_forward.1} parent=51 // pred_fallthru
        _
    $region52: #{pointnetv3_treg_forward.1} parent=5 // pred_fallthru
      _
    %p2164 = scmp.le.s32.totalorder 2, %s14
    // Predicated region
    $region61: #{pointnetv3_treg_forward.1} parent=5 // pred_check
      %p2165 = pneg %p2164
    $region62: #{pointnetv3_treg_forward.1} parent=5 // pred_check_branch
      %2167 = sbr.rel (%p2165) target = $region64
    $region63: #{pointnetv3_treg_forward.1} parent=5 // pred_region
      %s2168 = ssub.s32 %s14, 2
      // Predicated region
      $region65: #{pointnetv3_treg_forward.1} parent=63 // pred_check
        %p2169 = pneg %p246
      $region66: #{pointnetv3_treg_forward.1} parent=63 // pred_check_branch
        %2171 = sbr.rel (%p2169) target = $region68
      $region67: #{pointnetv3_treg_forward.1} parent=63 // pred_region
        %p2172 = scmp.lt.s32.totalorder %s27, 1
        %s2173 = scalar_select %p2172, %s27, 1
        %p2174 = scmp.lt.s32.totalorder %s28, 0
        %s2175 = scalar_select %p2174, %s28, 0
        %s2176 = smul.addr %s2175, 4
        %s2177 = smul.addr %s2173, 4
        %s2178 = sadd.s32 %s2176, %s2177
        %s2179 = scalar_lea.vmem %s8, %s2178
      $region68: #{pointnetv3_treg_forward.1} parent=63 // pred_fallthru
        _
    $region64: #{pointnetv3_treg_forward.1} parent=5 // pred_fallthru
      _
  $region6: #{pointnetv3_treg_forward.1} parent=0 // loop_footer
    %s18 = sadd.s32 1, %s14
  $region7: #{pointnetv3_treg_forward.1} parent=0 // loop_footer_branch
    %13 = sbr.rel target = $region3
  $region8: #{pointnetv3_treg_forward.1} parent=0 // loop_exit
    _

</llo_original>
